<compile_context>
chip_gen: v7x
topology: tpu7x:2x2x1
jax: 0.10.0
libtpu: 0.0.40
codegen_flags: <defaults>
</compile_context>

<pallas_src>
import functools

import jax
import jax.numpy as jnp
from jax.experimental import pallas as pl
from jax.experimental.pallas import tpu as pltpu


def _round_up(x, n=128):
    return ((x + n - 1) // n) * n


# ============================================================================
# Fused kernel:
#   conv1(k4,s2,p1)+ReLU -> conv2(k4,s2,p1)+ReLU -> conv3(k3,p1)
#   -> N x [ReLU, conv k3, ReLU, conv 1x1, +skip] -> ReLU -> pre_vq 1x1
# All intermediates live in VMEM.  Stride-2 convs are expressed as an
# even/odd phase fold (folded into the weights on the host) + shifted-slice
# matmuls; k=3 convs are 3 shifted-slice matmuls on a zero-padded scratch.
# ============================================================================
def _encoder_kernel(x_ref, w1a_ref, w1b_ref, b1_ref, u0_ref, u1_ref, b2_ref,
                    w3_ref, b3_ref, wa_ref, ba_ref, wb_ref, bb_ref,
                    wp_ref, bp_ref, o_ref, hext_ref, hp_ref,
                    *, m, p1, nres, compute_dtype):
    f32 = jnp.float32
    cdt = compute_dtype
    hpw = hp_ref.shape[1]                     # padded H (multiple of 128)

    # ---- downsample: conv1 + ReLU (even/odd phases jointly), conv2 + ReLU --
    va = x_ref[pl.ds(0, m + 1), :].astype(cdt)      # folded x, rows -1..m-1
    vb = x_ref[pl.ds(1, m + 1), :].astype(cdt)      # folded x, rows  0..m
    acc = jnp.dot(va, w1a_ref[...], preferred_element_type=f32)
    acc = acc + jnp.dot(vb, w1b_ref[...], preferred_element_type=f32)
    hext_ref[...] = jnp.maximum(acc + b1_ref[...], 0.0)        # [m+1, Hp]

    # Phantom phase entries correspond to conv2's zero padding and must be 0:
    # even phase at row m (h1 index L/2) and odd phase at row 0 (h1 index -1).
    hext_ref[pl.ds(m, 1), pl.ds(0, p1)] = jnp.zeros((1, p1), f32)
    hext_ref[pl.ds(0, 1), pl.ds(p1, p1)] = jnp.zeros((1, p1), f32)

    s0 = hext_ref[pl.ds(0, m), :].astype(cdt)
    s1 = hext_ref[pl.ds(1, m), :].astype(cdt)
    hid = jnp.dot(s0, u0_ref[...], preferred_element_type=f32)
    hid = hid + jnp.dot(s1, u1_ref[...], preferred_element_type=f32)
    hid = jnp.maximum(hid + b2_ref[...], 0.0)                   # [m, Hp]

    # ---- residual stack on zero-padded hp scratch ---------------------------
    # Zero ONLY the two pad rows, every grid step (do NOT gate on program_id:
    # under megacore "parallel" each TC owns its own scratch).
    hp_ref[pl.ds(0, 1), :] = jnp.zeros((1, hpw), f32)
    hp_ref[pl.ds(m + 1, 1), :] = jnp.zeros((1, hpw), f32)

    def conv_k3(taps, bias):
        a = jnp.dot(hp_ref[pl.ds(0, m), :].astype(cdt), taps[0],
                    preferred_element_type=f32)
        a = a + jnp.dot(hp_ref[pl.ds(1, m), :].astype(cdt), taps[1],
                        preferred_element_type=f32)
        a = a + jnp.dot(hp_ref[pl.ds(2, m), :].astype(cdt), taps[2],
                        preferred_element_type=f32)
        return a + bias

    # conv3 (no activation)
    hp_ref[pl.ds(1, m), :] = hid
    xcur = conv_k3([w3_ref[t] for t in range(3)], b3_ref[...])

    # residual blocks: x += conv_b(relu(conv_a(relu(x))))
    # TODO(synk): for very deep stacks switch to lax.fori_loop with dynamic
    # wa_ref[i]/wb_ref[i] indexing; static unroll is fine for nres <= ~4.
    for i in range(nres):
        hp_ref[pl.ds(1, m), :] = jnp.maximum(xcur, 0.0)
        a = conv_k3([wa_ref[i, t] for t in range(3)], ba_ref[i])
        a = jnp.maximum(a, 0.0)
        a = jnp.dot(a.astype(cdt), wb_ref[i],
                    preferred_element_type=f32) + bb_ref[i]
        xcur = xcur + a

    # final ReLU + pre-VQ 1x1 conv
    z = jnp.dot(jnp.maximum(xcur, 0.0).astype(cdt), wp_ref[...],
                preferred_element_type=f32)
    o_ref[...] = z + bp_ref[...]


def _const_spec(arr):
    nd = arr.ndim
    return pl.BlockSpec(arr.shape, lambda i, _nd=nd: (0,) * _nd)


def _encoder_call(xf, dsw, rsw, *, m, hp, ep, nres, compute_dtype):
    b = xf.shape[0]
    c4 = xf.shape[2]
    w1a, w1b, b1c, u0, u1, b2r = dsw
    w3s, b3r, wa, ba, wb, bb, wps, bpr = rsw
    p1 = hp // 2
    weights = (w1a, w1b, b1c, u0, u1, b2r, w3s, b3r, wa, ba, wb, bb, wps, bpr)

    kernel = functools.partial(_encoder_kernel, m=m, p1=p1, nres=nres,
                               compute_dtype=compute_dtype)
    return pl.pallas_call(
        kernel,
        out_shape=jax.ShapeDtypeStruct((b, m, ep), jnp.float32),
        grid=(b,),
        in_specs=[pl.BlockSpec((None, m + 2, c4), lambda i: (i, 0, 0))]
                 + [_const_spec(w) for w in weights],
        out_specs=pl.BlockSpec((None, m, ep), lambda i: (i, 0, 0)),
        scratch_shapes=[pltpu.VMEM((m + 1, hp), jnp.float32),   # hext
                        pltpu.VMEM((m + 2, hp), jnp.float32)],  # padded acts
        compiler_params=pltpu.CompilerParams(
            dimension_semantics=("parallel",)),
    )(xf, *weights)


# ============================================================================
# Host-side weight preparation (tiny, fused by XLA under jit)
# ============================================================================
def _prep_downsample_weights(w1, b1, w2, b2, compute_dtype):
    # w1: [H/2, Cin, 4], w2: [H, H/2, 4]   (PyTorch Conv1d layout)
    h2c, cin, _ = w1.shape
    h = w2.shape[0]
    assert h % 2 == 0
    hp = _round_up(h)          # padded width of hext / hid (multiple of 128)
    p1 = hp // 2               # padded per-phase width

    def padc(mat, cols):       # pad columns with zeros
        return jnp.pad(mat, ((0, 0), (0, cols - mat.shape[1])))

    def padrc(mat, rows, cols):
        return jnp.pad(mat, ((0, rows - mat.shape[0]), (0, cols - mat.shape[1])))

    w1t = [jnp.transpose(w1[:, :, t]) for t in range(4)]      # each [Cin, H/2]
    z = jnp.zeros((cin, h2c), jnp.float32)
    # even phase: h1[2p]   = x[4p-1]W0 + x[4p]W1 + x[4p+1]W2 + x[4p+2]W3
    a_e = jnp.concatenate([z, z, z, w1t[0]], axis=0)            # * vp[p-1]
    b_e = jnp.concatenate([w1t[1], w1t[2], w1t[3], z], axis=0)  # * vp[p]
    # odd phase:  h1[2p-1] = x[4p-3]W0 + x[4p-2]W1 + x[4p-1]W2 + x[4p]W3
    a_o = jnp.concatenate([z, w1t[0], w1t[1], w1t[2]], axis=0)
    b_o = jnp.concatenate([w1t[3], z, z, z], axis=0)
    w1a = jnp.concatenate([padc(a_e, p1), padc(a_o, p1)], axis=1).astype(compute_dtype)
    w1b = jnp.concatenate([padc(b_e, p1), padc(b_o, p1)], axis=1).astype(compute_dtype)
    b1p = jnp.pad(b1, (0, p1 - h2c))
    b1c = jnp.concatenate([b1p, b1p]).reshape(1, hp).astype(jnp.float32)

    w2t = [jnp.transpose(w2[:, :, t]) for t in range(4)]        # each [H/2, H]
    # out2[j] = E[j]W2_1 + O[j]W2_0 + E[j+1]W2_3 + O[j+1]W2_2
    u0 = jnp.concatenate([padrc(w2t[1], p1, hp), padrc(w2t[0], p1, hp)],
                         axis=0).astype(compute_dtype)           # [hp, hp]
    u1 = jnp.concatenate([padrc(w2t[3], p1, hp), padrc(w2t[2], p1, hp)],
                         axis=0).astype(compute_dtype)
    b2r = jnp.pad(b2, (0, hp - h)).reshape(1, hp).astype(jnp.float32)
    return (w1a, w1b, b1c, u0, u1, b2r), hp


def _prep_resstack_weights(params, nres, h, compute_dtype):
    hp = _round_up(h)
    w3, b3 = params["conv3"]
    w3s = jnp.transpose(w3, (2, 1, 0))                           # [3, H, H]
    w3s = jnp.pad(w3s, ((0, 0), (0, hp - h), (0, hp - h))).astype(compute_dtype)
    b3r = jnp.pad(b3, (0, hp - h)).reshape(1, hp).astype(jnp.float32)

    if nres > 0:
        rh = params["res0_a"][0].shape[0]
        rhp = _round_up(rh)
        wa = jnp.stack([jnp.transpose(params[f"res{i}_a"][0], (2, 1, 0))
                        for i in range(nres)], 0)                # [n,3,H,Rh]
        wa = jnp.pad(wa, ((0, 0), (0, 0), (0, hp - h), (0, rhp - rh))
                     ).astype(compute_dtype)
        ba = jnp.stack([params[f"res{i}_a"][1] for i in range(nres)], 0)
        ba = jnp.pad(ba, ((0, 0), (0, rhp - rh))
                     ).reshape(nres, 1, rhp).astype(jnp.float32)
        wb = jnp.stack([jnp.transpose(params[f"res{i}_b"][0], (2, 1, 0))[0]
                        for i in range(nres)], 0)                # [n,Rh,H]
        wb = jnp.pad(wb, ((0, 0), (0, rhp - rh), (0, hp - h))
                     ).astype(compute_dtype)
        bb = jnp.stack([params[f"res{i}_b"][1] for i in range(nres)], 0)
        bb = jnp.pad(bb, ((0, 0), (0, hp - h))
                     ).reshape(nres, 1, hp).astype(jnp.float32)
    else:  # dummies (never read by the unrolled loop)
        rhp = 128
        wa = jnp.zeros((1, 3, hp, rhp), compute_dtype)
        ba = jnp.zeros((1, 1, rhp), jnp.float32)
        wb = jnp.zeros((1, rhp, hp), compute_dtype)
        bb = jnp.zeros((1, 1, hp), jnp.float32)

    wp, bp = params["pre_vq"]
    e = wp.shape[0]
    ep = _round_up(e)
    wps = jnp.transpose(wp, (2, 1, 0))[0]                        # [H, E]
    wps = jnp.pad(wps, ((0, hp - h), (0, ep - e))).astype(compute_dtype)
    bpr = jnp.pad(bp, (0, ep - e)).reshape(1, ep).astype(jnp.float32)
    return (w3s, b3r, wa, ba, wb, bb, wps, bpr), ep


# ============================================================================
# Parameter init (PyTorch-default-style uniform fan-in)
# ============================================================================
def _init_conv(key, cout, cin, k):
    k1, k2 = jax.random.split(key)
    bound = 1.0 / (cin * k) ** 0.5
    w = jax.random.uniform(k1, (cout, cin, k), jnp.float32, -bound, bound)
    b = jax.random.uniform(k2, (cout,), jnp.float32, -bound, bound)
    return w, b


def init_unet_encoder_params(key, in_channels, embedding_dim,
                             num_residual_layers, num_residual_hiddens):
    h = embedding_dim
    params = {}
    keys = jax.random.split(key, 4 + 2 * num_residual_layers)
    params["conv1"] = _init_conv(keys[0], h // 2, in_channels, 4)
    params["conv2"] = _init_conv(keys[1], h, h // 2, 4)
    params["conv3"] = _init_conv(keys[2], h, h, 3)
    for i in range(num_residual_layers):
        params[f"res{i}_a"] = _init_conv(keys[3 + 2 * i], num_residual_hiddens, h, 3)
        params[f"res{i}_b"] = _init_conv(keys[4 + 2 * i], h, num_residual_hiddens, 1)
    params["pre_vq"] = _init_conv(keys[3 + 2 * num_residual_layers],
                                  embedding_dim, h, 1)
    return params


# ============================================================================
# Forward:  x [B, Cin, L] -> z_e [B, embedding_dim, L//4]
# ============================================================================
def unet_encoder_forward(x_ncl, params, num_residual_layers,
                         compute_dtype=jnp.bfloat16):
    b, cin, l = x_ncl.shape
    assert l % 4 == 0, "in_length must be divisible by 4"
    h = params["conv2"][0].shape[0]
    e = params["pre_vq"][0].shape[0]
    m = l // 4

    w1, b1 = params["conv1"]
    w2, b2 = params["conv2"]
    dsw, hp = _prep_downsample_weights(w1, b1, w2, b2, compute_dtype)
    rsw, ep = _prep_resstack_weights(params, num_residual_layers, h, compute_dtype)

    # Fold 4 input taps into channels (free reshape) + length-1 zero pad.
    x_blc = jnp.transpose(x_ncl, (0, 2, 1))               # [B, L, Cin]
    xf = x_blc.reshape(b, m, 4 * cin)                      # [B, M, 4C]
    xf = jnp.pad(xf, ((0, 0), (1, 1), (0, 0)))             # [B, M+2, 4C]

    z = _encoder_call(xf, dsw, rsw, m=m, hp=hp, ep=ep,
                      nres=num_residual_layers,
                      compute_dtype=compute_dtype)         # [B, M, Ep]
    z = z[:, :, :e]                                        # drop channel padding
    return jnp.transpose(z, (0, 2, 1))                     # [B, E, M]


# ============================================================================
# Pure-JAX reference (XLA convolutions) for correctness checking
# ============================================================================
def _conv1d_ref(x, w, b, stride, pad):
    y = jax.lax.conv_general_dilated(
        x, w, window_strides=(stride,), padding=[(pad, pad)],
        dimension_numbers=("NCH", "OIH", "NCH"))
    return y + b[None, :, None]


def unet_encoder_reference(x, params, nres):
    w, b = params["conv1"]; h = jax.nn.relu(_conv1d_ref(x, w, b, 2, 1))
    w, b = params["conv2"]; h = jax.nn.relu(_conv1d_ref(h, w, b, 2, 1))
    w, b = params["conv3"]; h = _conv1d_ref(h, w, b, 1, 1)
    for i in range(nres):
        wa, ba = params[f"res{i}_a"]
        wb, bb = params[f"res{i}_b"]
        t = jax.nn.relu(_conv1d_ref(jax.nn.relu(h), wa, ba, 1, 1))
        h = h + _conv1d_ref(t, wb, bb, 1, 0)
    w, b = params["pre_vq"]
    return _conv1d_ref(jax.nn.relu(h), w, b, 1, 0)


# ============================================================================
if __name__ == "__main__":
    B = 2
    in_channels = 1
    num_embeddings = 8                  # final encoder length
    in_length = 4 * num_embeddings      # two stride-2 convs: /4
    embedding_dim = 32
    num_residual_layers = 2
    num_residual_hiddens = 16

    key = jax.random.PRNGKey(0)
    k_param, k_x = jax.random.split(key)

    params = init_unet_encoder_params(
        k_param, in_channels, embedding_dim,
        num_residual_layers, num_residual_hiddens)

    x = jax.random.normal(k_x, (B, in_channels, in_length), jnp.float32)

    z_ref = unet_encoder_reference(x, params, num_residual_layers)

    # Tight-tolerance check with f32 MXU operands (catches phase/padding bugs).
    fwd32 = jax.jit(functools.partial(
        unet_encoder_forward, num_residual_layers=num_residual_layers,
        compute_dtype=jnp.float32))
    z32 = fwd32(x, params)
    jax.block_until_ready(z32)
    assert z32.shape == (B, embedding_dim, num_embeddings), z32.shape
    err32 = float(jnp.max(jnp.abs(z32 - z_ref)))
    assert err32 < 2e-4, f"f32 mismatch vs reference: {err32}"

    # Production bf16 path.
    fwd = jax.jit(functools.partial(
        unet_encoder_forward, num_residual_layers=num_residual_layers,
        compute_dtype=jnp.bfloat16))
    z_e = fwd(x, params)
    jax.block_until_ready(z_e)

    assert z_e.shape == (B, embedding_dim, num_embeddings), z_e.shape
    assert z_e.dtype == jnp.float32
    assert bool(jnp.all(jnp.isfinite(z_e)))
    max_err = float(jnp.max(jnp.abs(z_e - z_ref)))
    assert max_err < 5e-2, f"bf16 mismatch vs reference: {max_err}"
    print("KERNEL_OK")
</pallas_src>

<mosaic_0001>
module attributes {stable_mosaic.version = 11 : i64} {
  func.func @_encoder_kernel(%arg0: i32, %arg1: memref<1x10x4xf32, #tpu.memory_space<vmem>>, %arg2: memref<4x128xf32, #tpu.memory_space<vmem>>, %arg3: memref<4x128xf32, #tpu.memory_space<vmem>>, %arg4: memref<1x128xf32, #tpu.memory_space<vmem>>, %arg5: memref<128x128xf32, #tpu.memory_space<vmem>>, %arg6: memref<128x128xf32, #tpu.memory_space<vmem>>, %arg7: memref<1x128xf32, #tpu.memory_space<vmem>>, %arg8: memref<3x128x128xf32, #tpu.memory_space<vmem>>, %arg9: memref<1x128xf32, #tpu.memory_space<vmem>>, %arg10: memref<2x3x128x128xf32, #tpu.memory_space<vmem>>, %arg11: memref<2x1x128xf32, #tpu.memory_space<vmem>>, %arg12: memref<2x128x128xf32, #tpu.memory_space<vmem>>, %arg13: memref<2x1x128xf32, #tpu.memory_space<vmem>>, %arg14: memref<128x128xf32, #tpu.memory_space<vmem>>, %arg15: memref<1x128xf32, #tpu.memory_space<vmem>>, %arg16: memref<1x8x128xf32, #tpu.memory_space<vmem>>, %arg17: memref<9x128xf32, #tpu.memory_space<vmem>>, %arg18: memref<10x128xf32, #tpu.memory_space<vmem>>) attributes {dimension_semantics = [#tpu.dimension_semantics<parallel>], iteration_bounds = array<i64: 2>, scalar_prefetch = 0 : i64, scratch_operands = 2 : i64, tpu.core_type = #tpu.core_type<tc>, window_params = [{transform_indices = @transform_0, window_bounds = array<i64: 1, 10, 4>}, {pipeline_mode = #tpu.pipeline_mode<synchronous>, transform_indices = @transform_1, window_bounds = array<i64: 4, 128>}, {pipeline_mode = #tpu.pipeline_mode<synchronous>, transform_indices = @transform_2, window_bounds = array<i64: 4, 128>}, {pipeline_mode = #tpu.pipeline_mode<synchronous>, transform_indices = @transform_3, window_bounds = array<i64: 1, 128>}, {pipeline_mode = #tpu.pipeline_mode<synchronous>, transform_indices = @transform_4, window_bounds = array<i64: 128, 128>}, {pipeline_mode = #tpu.pipeline_mode<synchronous>, transform_indices = @transform_5, window_bounds = array<i64: 128, 128>}, {pipeline_mode = #tpu.pipeline_mode<synchronous>, transform_indices = @transform_6, window_bounds = array<i64: 1, 128>}, {pipeline_mode = #tpu.pipeline_mode<synchronous>, transform_indices = @transform_7, window_bounds = array<i64: 3, 128, 128>}, {pipeline_mode = #tpu.pipeline_mode<synchronous>, transform_indices = @transform_8, window_bounds = array<i64: 1, 128>}, {pipeline_mode = #tpu.pipeline_mode<synchronous>, transform_indices = @transform_9, window_bounds = array<i64: 2, 3, 128, 128>}, {pipeline_mode = #tpu.pipeline_mode<synchronous>, transform_indices = @transform_10, window_bounds = array<i64: 2, 1, 128>}, {pipeline_mode = #tpu.pipeline_mode<synchronous>, transform_indices = @transform_11, window_bounds = array<i64: 2, 128, 128>}, {pipeline_mode = #tpu.pipeline_mode<synchronous>, transform_indices = @transform_12, window_bounds = array<i64: 2, 1, 128>}, {pipeline_mode = #tpu.pipeline_mode<synchronous>, transform_indices = @transform_13, window_bounds = array<i64: 128, 128>}, {pipeline_mode = #tpu.pipeline_mode<synchronous>, transform_indices = @transform_14, window_bounds = array<i64: 1, 128>}, {transform_indices = @transform_15, window_bounds = array<i64: 1, 8, 128>}]} {
    %c0 = arith.constant 0 : index
    %c0_0 = arith.constant 0 : index
    %c0_1 = arith.constant 0 : index
    %0 = vector.load %arg1[%c0, %c0_0, %c0_1] : memref<1x10x4xf32, #tpu.memory_space<vmem>>, vector<1x9x4xf32>
    %1 = vector.shape_cast %0 : vector<1x9x4xf32> to vector<9x4xf32>
    %c0_2 = arith.constant 0 : index
    %c1 = arith.constant 1 : index
    %c0_3 = arith.constant 0 : index
    %2 = vector.load %arg1[%c0_2, %c1, %c0_3] : memref<1x10x4xf32, #tpu.memory_space<vmem>>, vector<1x9x4xf32>
    %3 = vector.shape_cast %2 : vector<1x9x4xf32> to vector<9x4xf32>
    %c0_4 = arith.constant 0 : index
    %c0_5 = arith.constant 0 : index
    %4 = vector.load %arg2[%c0_4, %c0_5] : memref<4x128xf32, #tpu.memory_space<vmem>>, vector<4x128xf32>
    %cst = arith.constant dense<0.000000e+00> : vector<9x128xf32>
    %5 = tpu.matmul %1, %4, %cst {dimension_numbers = #tpu.dot_dimension_numbers<[1], [0], [0], [1], [0, 0, 1, 1], [], []>} : vector<9x4xf32>, vector<4x128xf32>, vector<9x128xf32> -> vector<9x128xf32>
    %c0_6 = arith.constant 0 : index
    %c0_7 = arith.constant 0 : index
    %6 = vector.load %arg3[%c0_6, %c0_7] : memref<4x128xf32, #tpu.memory_space<vmem>>, vector<4x128xf32>
    %cst_8 = arith.constant dense<0.000000e+00> : vector<9x128xf32>
    %7 = tpu.matmul %3, %6, %cst_8 {dimension_numbers = #tpu.dot_dimension_numbers<[1], [0], [0], [1], [0, 0, 1, 1], [], []>} : vector<9x4xf32>, vector<4x128xf32>, vector<9x128xf32> -> vector<9x128xf32>
    %8 = arith.addf %5, %7 : vector<9x128xf32>
    %c0_9 = arith.constant 0 : index
    %c0_10 = arith.constant 0 : index
    %9 = vector.load %arg4[%c0_9, %c0_10] : memref<1x128xf32, #tpu.memory_space<vmem>>, vector<1x128xf32>
    %10 = vector.broadcast %9 : vector<1x128xf32> to vector<9x128xf32>
    %11 = arith.addf %8, %10 : vector<9x128xf32>
    %cst_11 = arith.constant 0.000000e+00 : f32
    %12 = vector.broadcast %cst_11 : f32 to vector<9x128xf32>
    %13 = arith.maximumf %11, %12 : vector<9x128xf32>
    %c0_12 = arith.constant 0 : index
    %c0_13 = arith.constant 0 : index
    %14 = vector.load %arg17[%c0_12, %c0_13] : memref<9x128xf32, #tpu.memory_space<vmem>>, vector<9x128xf32>
    tpu.vector_store %arg17[%c0_12, %c0_13], %13 {strides = array<i32>} : memref<9x128xf32, #tpu.memory_space<vmem>>, vector<9x128xf32>,
    %cst_14 = arith.constant 0.000000e+00 : f32
    %15 = vector.broadcast %cst_14 : f32 to vector<1x64xf32>
    %c8 = arith.constant 8 : index
    %c0_15 = arith.constant 0 : index
    %16 = vector.load %arg17[%c8, %c0_15] : memref<9x128xf32, #tpu.memory_space<vmem>>, vector<1x64xf32>
    tpu.vector_store %arg17[%c8, %c0_15], %15 {strides = array<i32>} : memref<9x128xf32, #tpu.memory_space<vmem>>, vector<1x64xf32>,
    %cst_16 = arith.constant 0.000000e+00 : f32
    %17 = vector.broadcast %cst_16 : f32 to vector<1x64xf32>
    %c0_17 = arith.constant 0 : index
    %c64 = arith.constant 64 : index
    %18 = vector.load %arg17[%c0_17, %c64] : memref<9x128xf32, #tpu.memory_space<vmem>>, vector<1x64xf32>
    tpu.vector_store %arg17[%c0_17, %c64], %17 {strides = array<i32>} : memref<9x128xf32, #tpu.memory_space<vmem>>, vector<1x64xf32>,
    %c0_18 = arith.constant 0 : index
    %c0_19 = arith.constant 0 : index
    %19 = vector.load %arg17[%c0_18, %c0_19] : memref<9x128xf32, #tpu.memory_space<vmem>>, vector<8x128xf32>
    %c1_20 = arith.constant 1 : index
    %c0_21 = arith.constant 0 : index
    %20 = vector.load %arg17[%c1_20, %c0_21] : memref<9x128xf32, #tpu.memory_space<vmem>>, vector<8x128xf32>
    %c0_22 = arith.constant 0 : index
    %c0_23 = arith.constant 0 : index
    %21 = vector.load %arg5[%c0_22, %c0_23] : memref<128x128xf32, #tpu.memory_space<vmem>>, vector<128x128xf32>
    %cst_24 = arith.constant dense<0.000000e+00> : vector<8x128xf32>
    %22 = tpu.matmul %19, %21, %cst_24 {dimension_numbers = #tpu.dot_dimension_numbers<[1], [0], [0], [1], [0, 0, 1, 1], [], []>} : vector<8x128xf32>, vector<128x128xf32>, vector<8x128xf32> -> vector<8x128xf32>
    %c0_25 = arith.constant 0 : index
    %c0_26 = arith.constant 0 : index
    %23 = vector.load %arg6[%c0_25, %c0_26] : memref<128x128xf32, #tpu.memory_space<vmem>>, vector<128x128xf32>
    %cst_27 = arith.constant dense<0.000000e+00> : vector<8x128xf32>
    %24 = tpu.matmul %20, %23, %cst_27 {dimension_numbers = #tpu.dot_dimension_numbers<[1], [0], [0], [1], [0, 0, 1, 1], [], []>} : vector<8x128xf32>, vector<128x128xf32>, vector<8x128xf32> -> vector<8x128xf32>
    %25 = arith.addf %22, %24 : vector<8x128xf32>
    %c0_28 = arith.constant 0 : index
    %c0_29 = arith.constant 0 : index
    %26 = vector.load %arg7[%c0_28, %c0_29] : memref<1x128xf32, #tpu.memory_space<vmem>>, vector<1x128xf32>
    %27 = vector.broadcast %26 : vector<1x128xf32> to vector<8x128xf32>
    %28 = arith.addf %25, %27 : vector<8x128xf32>
    %cst_30 = arith.constant 0.000000e+00 : f32
    %29 = vector.broadcast %cst_30 : f32 to vector<8x128xf32>
    %30 = arith.maximumf %28, %29 : vector<8x128xf32>
    %cst_31 = arith.constant 0.000000e+00 : f32
    %31 = vector.broadcast %cst_31 : f32 to vector<1x128xf32>
    %c0_32 = arith.constant 0 : index
    %c0_33 = arith.constant 0 : index
    %32 = vector.load %arg18[%c0_32, %c0_33] : memref<10x128xf32, #tpu.memory_space<vmem>>, vector<1x128xf32>
    tpu.vector_store %arg18[%c0_32, %c0_33], %31 {strides = array<i32>} : memref<10x128xf32, #tpu.memory_space<vmem>>, vector<1x128xf32>,
    %cst_34 = arith.constant 0.000000e+00 : f32
    %33 = vector.broadcast %cst_34 : f32 to vector<1x128xf32>
    %c9 = arith.constant 9 : index
    %c0_35 = arith.constant 0 : index
    %34 = vector.load %arg18[%c9, %c0_35] : memref<10x128xf32, #tpu.memory_space<vmem>>, vector<1x128xf32>
    tpu.vector_store %arg18[%c9, %c0_35], %33 {strides = array<i32>} : memref<10x128xf32, #tpu.memory_space<vmem>>, vector<1x128xf32>,
    %c1_36 = arith.constant 1 : index
    %c0_37 = arith.constant 0 : index
    %35 = vector.load %arg18[%c1_36, %c0_37] : memref<10x128xf32, #tpu.memory_space<vmem>>, vector<8x128xf32>
    tpu.vector_store %arg18[%c1_36, %c0_37], %30 {strides = array<i32>} : memref<10x128xf32, #tpu.memory_space<vmem>>, vector<8x128xf32>,
    %c0_38 = arith.constant 0 : index
    %c0_39 = arith.constant 0 : index
    %c0_40 = arith.constant 0 : index
    %36 = vector.load %arg8[%c0_38, %c0_39, %c0_40] : memref<3x128x128xf32, #tpu.memory_space<vmem>>, vector<1x128x128xf32>
    %37 = vector.shape_cast %36 : vector<1x128x128xf32> to vector<128x128xf32>
    %c1_41 = arith.constant 1 : index
    %c0_42 = arith.constant 0 : index
    %c0_43 = arith.constant 0 : index
    %38 = vector.load %arg8[%c1_41, %c0_42, %c0_43] : memref<3x128x128xf32, #tpu.memory_space<vmem>>, vector<1x128x128xf32>
    %39 = vector.shape_cast %38 : vector<1x128x128xf32> to vector<128x128xf32>
    %c2 = arith.constant 2 : index
    %c0_44 = arith.constant 0 : index
    %c0_45 = arith.constant 0 : index
    %40 = vector.load %arg8[%c2, %c0_44, %c0_45] : memref<3x128x128xf32, #tpu.memory_space<vmem>>, vector<1x128x128xf32>
    %41 = vector.shape_cast %40 : vector<1x128x128xf32> to vector<128x128xf32>
    %c0_46 = arith.constant 0 : index
    %c0_47 = arith.constant 0 : index
    %42 = vector.load %arg9[%c0_46, %c0_47] : memref<1x128xf32, #tpu.memory_space<vmem>>, vector<1x128xf32>
    %c0_48 = arith.constant 0 : index
    %c0_49 = arith.constant 0 : index
    %43 = vector.load %arg18[%c0_48, %c0_49] : memref<10x128xf32, #tpu.memory_space<vmem>>, vector<8x128xf32>
    %cst_50 = arith.constant dense<0.000000e+00> : vector<8x128xf32>
    %44 = tpu.matmul %43, %37, %cst_50 {dimension_numbers = #tpu.dot_dimension_numbers<[1], [0], [0], [1], [0, 0, 1, 1], [], []>} : vector<8x128xf32>, vector<128x128xf32>, vector<8x128xf32> -> vector<8x128xf32>
    %c1_51 = arith.constant 1 : index
    %c0_52 = arith.constant 0 : index
    %45 = vector.load %arg18[%c1_51, %c0_52] : memref<10x128xf32, #tpu.memory_space<vmem>>, vector<8x128xf32>
    %cst_53 = arith.constant dense<0.000000e+00> : vector<8x128xf32>
    %46 = tpu.matmul %45, %39, %cst_53 {dimension_numbers = #tpu.dot_dimension_numbers<[1], [0], [0], [1], [0, 0, 1, 1], [], []>} : vector<8x128xf32>, vector<128x128xf32>, vector<8x128xf32> -> vector<8x128xf32>
    %47 = arith.addf %44, %46 : vector<8x128xf32>
    %c2_54 = arith.constant 2 : index
    %c0_55 = arith.constant 0 : index
    %48 = vector.load %arg18[%c2_54, %c0_55] : memref<10x128xf32, #tpu.memory_space<vmem>>, vector<8x128xf32>
    %cst_56 = arith.constant dense<0.000000e+00> : vector<8x128xf32>
    %49 = tpu.matmul %48, %41, %cst_56 {dimension_numbers = #tpu.dot_dimension_numbers<[1], [0], [0], [1], [0, 0, 1, 1], [], []>} : vector<8x128xf32>, vector<128x128xf32>, vector<8x128xf32> -> vector<8x128xf32>
    %50 = arith.addf %47, %49 : vector<8x128xf32>
    %51 = vector.broadcast %42 : vector<1x128xf32> to vector<8x128xf32>
    %52 = arith.addf %50, %51 : vector<8x128xf32>
    %cst_57 = arith.constant 0.000000e+00 : f32
    %53 = vector.broadcast %cst_57 : f32 to vector<8x128xf32>
    %54 = arith.maximumf %52, %53 : vector<8x128xf32>
    %c1_58 = arith.constant 1 : index
    %c0_59 = arith.constant 0 : index
    %55 = vector.load %arg18[%c1_58, %c0_59] : memref<10x128xf32, #tpu.memory_space<vmem>>, vector<8x128xf32>
    tpu.vector_store %arg18[%c1_58, %c0_59], %54 {strides = array<i32>} : memref<10x128xf32, #tpu.memory_space<vmem>>, vector<8x128xf32>,
    %c0_60 = arith.constant 0 : index
    %c0_61 = arith.constant 0 : index
    %c0_62 = arith.constant 0 : index
    %c0_63 = arith.constant 0 : index
    %56 = vector.load %arg10[%c0_60, %c0_61, %c0_62, %c0_63] : memref<2x3x128x128xf32, #tpu.memory_space<vmem>>, vector<1x1x128x128xf32>
    %57 = vector.shape_cast %56 : vector<1x1x128x128xf32> to vector<128x128xf32>
    %c0_64 = arith.constant 0 : index
    %c1_65 = arith.constant 1 : index
    %c0_66 = arith.constant 0 : index
    %c0_67 = arith.constant 0 : index
    %58 = vector.load %arg10[%c0_64, %c1_65, %c0_66, %c0_67] : memref<2x3x128x128xf32, #tpu.memory_space<vmem>>, vector<1x1x128x128xf32>
    %59 = vector.shape_cast %58 : vector<1x1x128x128xf32> to vector<128x128xf32>
    %c0_68 = arith.constant 0 : index
    %c2_69 = arith.constant 2 : index
    %c0_70 = arith.constant 0 : index
    %c0_71 = arith.constant 0 : index
    %60 = vector.load %arg10[%c0_68, %c2_69, %c0_70, %c0_71] : memref<2x3x128x128xf32, #tpu.memory_space<vmem>>, vector<1x1x128x128xf32>
    %61 = vector.shape_cast %60 : vector<1x1x128x128xf32> to vector<128x128xf32>
    %c0_72 = arith.constant 0 : index
    %c0_73 = arith.constant 0 : index
    %c0_74 = arith.constant 0 : index
    %62 = vector.load %arg11[%c0_72, %c0_73, %c0_74] : memref<2x1x128xf32, #tpu.memory_space<vmem>>, vector<1x1x128xf32>
    %63 = vector.shape_cast %62 : vector<1x1x128xf32> to vector<1x128xf32>
    %c0_75 = arith.constant 0 : index
    %c0_76 = arith.constant 0 : index
    %64 = vector.load %arg18[%c0_75, %c0_76] : memref<10x128xf32, #tpu.memory_space<vmem>>, vector<8x128xf32>
    %cst_77 = arith.constant dense<0.000000e+00> : vector<8x128xf32>
    %65 = tpu.matmul %64, %57, %cst_77 {dimension_numbers = #tpu.dot_dimension_numbers<[1], [0], [0], [1], [0, 0, 1, 1], [], []>} : vector<8x128xf32>, vector<128x128xf32>, vector<8x128xf32> -> vector<8x128xf32>
    %c1_78 = arith.constant 1 : index
    %c0_79 = arith.constant 0 : index
    %66 = vector.load %arg18[%c1_78, %c0_79] : memref<10x128xf32, #tpu.memory_space<vmem>>, vector<8x128xf32>
    %cst_80 = arith.constant dense<0.000000e+00> : vector<8x128xf32>
    %67 = tpu.matmul %66, %59, %cst_80 {dimension_numbers = #tpu.dot_dimension_numbers<[1], [0], [0], [1], [0, 0, 1, 1], [], []>} : vector<8x128xf32>, vector<128x128xf32>, vector<8x128xf32> -> vector<8x128xf32>
    %68 = arith.addf %65, %67 : vector<8x128xf32>
    %c2_81 = arith.constant 2 : index
    %c0_82 = arith.constant 0 : index
    %69 = vector.load %arg18[%c2_81, %c0_82] : memref<10x128xf32, #tpu.memory_space<vmem>>, vector<8x128xf32>
    %cst_83 = arith.constant dense<0.000000e+00> : vector<8x128xf32>
    %70 = tpu.matmul %69, %61, %cst_83 {dimension_numbers = #tpu.dot_dimension_numbers<[1], [0], [0], [1], [0, 0, 1, 1], [], []>} : vector<8x128xf32>, vector<128x128xf32>, vector<8x128xf32> -> vector<8x128xf32>
    %71 = arith.addf %68, %70 : vector<8x128xf32>
    %72 = vector.broadcast %63 : vector<1x128xf32> to vector<8x128xf32>
    %73 = arith.addf %71, %72 : vector<8x128xf32>
    %cst_84 = arith.constant 0.000000e+00 : f32
    %74 = vector.broadcast %cst_84 : f32 to vector<8x128xf32>
    %75 = arith.maximumf %73, %74 : vector<8x128xf32>
    %c0_85 = arith.constant 0 : index
    %c0_86 = arith.constant 0 : index
    %c0_87 = arith.constant 0 : index
    %76 = vector.load %arg12[%c0_85, %c0_86, %c0_87] : memref<2x128x128xf32, #tpu.memory_space<vmem>>, vector<1x128x128xf32>
    %77 = vector.shape_cast %76 : vector<1x128x128xf32> to vector<128x128xf32>
    %cst_88 = arith.constant dense<0.000000e+00> : vector<8x128xf32>
    %78 = tpu.matmul %75, %77, %cst_88 {dimension_numbers = #tpu.dot_dimension_numbers<[1], [0], [0], [1], [0, 0, 1, 1], [], []>} : vector<8x128xf32>, vector<128x128xf32>, vector<8x128xf32> -> vector<8x128xf32>
    %c0_89 = arith.constant 0 : index
    %c0_90 = arith.constant 0 : index
    %c0_91 = arith.constant 0 : index
    %79 = vector.load %arg13[%c0_89, %c0_90, %c0_91] : memref<2x1x128xf32, #tpu.memory_space<vmem>>, vector<1x1x128xf32>
    %80 = vector.shape_cast %79 : vector<1x1x128xf32> to vector<1x128xf32>
    %81 = vector.broadcast %80 : vector<1x128xf32> to vector<8x128xf32>
    %82 = arith.addf %78, %81 : vector<8x128xf32>
    %83 = arith.addf %52, %82 : vector<8x128xf32>
    %cst_92 = arith.constant 0.000000e+00 : f32
    %84 = vector.broadcast %cst_92 : f32 to vector<8x128xf32>
    %85 = arith.maximumf %83, %84 : vector<8x128xf32>
    %c1_93 = arith.constant 1 : index
    %c0_94 = arith.constant 0 : index
    %86 = vector.load %arg18[%c1_93, %c0_94] : memref<10x128xf32, #tpu.memory_space<vmem>>, vector<8x128xf32>
    tpu.vector_store %arg18[%c1_93, %c0_94], %85 {strides = array<i32>} : memref<10x128xf32, #tpu.memory_space<vmem>>, vector<8x128xf32>,
    %c1_95 = arith.constant 1 : index
    %c0_96 = arith.constant 0 : index
    %c0_97 = arith.constant 0 : index
    %c0_98 = arith.constant 0 : index
    %87 = vector.load %arg10[%c1_95, %c0_96, %c0_97, %c0_98] : memref<2x3x128x128xf32, #tpu.memory_space<vmem>>, vector<1x1x128x128xf32>
    %88 = vector.shape_cast %87 : vector<1x1x128x128xf32> to vector<128x128xf32>
    %c1_99 = arith.constant 1 : index
    %c1_100 = arith.constant 1 : index
    %c0_101 = arith.constant 0 : index
    %c0_102 = arith.constant 0 : index
    %89 = vector.load %arg10[%c1_99, %c1_100, %c0_101, %c0_102] : memref<2x3x128x128xf32, #tpu.memory_space<vmem>>, vector<1x1x128x128xf32>
    %90 = vector.shape_cast %89 : vector<1x1x128x128xf32> to vector<128x128xf32>
    %c1_103 = arith.constant 1 : index
    %c2_104 = arith.constant 2 : index
    %c0_105 = arith.constant 0 : index
    %c0_106 = arith.constant 0 : index
    %91 = vector.load %arg10[%c1_103, %c2_104, %c0_105, %c0_106] : memref<2x3x128x128xf32, #tpu.memory_space<vmem>>, vector<1x1x128x128xf32>
    %92 = vector.shape_cast %91 : vector<1x1x128x128xf32> to vector<128x128xf32>
    %c1_107 = arith.constant 1 : index
    %c0_108 = arith.constant 0 : index
    %c0_109 = arith.constant 0 : index
    %93 = vector.load %arg11[%c1_107, %c0_108, %c0_109] : memref<2x1x128xf32, #tpu.memory_space<vmem>>, vector<1x1x128xf32>
    %94 = vector.shape_cast %93 : vector<1x1x128xf32> to vector<1x128xf32>
    %c0_110 = arith.constant 0 : index
    %c0_111 = arith.constant 0 : index
    %95 = vector.load %arg18[%c0_110, %c0_111] : memref<10x128xf32, #tpu.memory_space<vmem>>, vector<8x128xf32>
    %cst_112 = arith.constant dense<0.000000e+00> : vector<8x128xf32>
    %96 = tpu.matmul %95, %88, %cst_112 {dimension_numbers = #tpu.dot_dimension_numbers<[1], [0], [0], [1], [0, 0, 1, 1], [], []>} : vector<8x128xf32>, vector<128x128xf32>, vector<8x128xf32> -> vector<8x128xf32>
    %c1_113 = arith.constant 1 : index
    %c0_114 = arith.constant 0 : index
    %97 = vector.load %arg18[%c1_113, %c0_114] : memref<10x128xf32, #tpu.memory_space<vmem>>, vector<8x128xf32>
    %cst_115 = arith.constant dense<0.000000e+00> : vector<8x128xf32>
    %98 = tpu.matmul %97, %90, %cst_115 {dimension_numbers = #tpu.dot_dimension_numbers<[1], [0], [0], [1], [0, 0, 1, 1], [], []>} : vector<8x128xf32>, vector<128x128xf32>, vector<8x128xf32> -> vector<8x128xf32>
    %99 = arith.addf %96, %98 : vector<8x128xf32>
    %c2_116 = arith.constant 2 : index
    %c0_117 = arith.constant 0 : index
    %100 = vector.load %arg18[%c2_116, %c0_117] : memref<10x128xf32, #tpu.memory_space<vmem>>, vector<8x128xf32>
    %cst_118 = arith.constant dense<0.000000e+00> : vector<8x128xf32>
    %101 = tpu.matmul %100, %92, %cst_118 {dimension_numbers = #tpu.dot_dimension_numbers<[1], [0], [0], [1], [0, 0, 1, 1], [], []>} : vector<8x128xf32>, vector<128x128xf32>, vector<8x128xf32> -> vector<8x128xf32>
    %102 = arith.addf %99, %101 : vector<8x128xf32>
    %103 = vector.broadcast %94 : vector<1x128xf32> to vector<8x128xf32>
    %104 = arith.addf %102, %103 : vector<8x128xf32>
    %cst_119 = arith.constant 0.000000e+00 : f32
    %105 = vector.broadcast %cst_119 : f32 to vector<8x128xf32>
    %106 = arith.maximumf %104, %105 : vector<8x128xf32>
    %c1_120 = arith.constant 1 : index
    %c0_121 = arith.constant 0 : index
    %c0_122 = arith.constant 0 : index
    %107 = vector.load %arg12[%c1_120, %c0_121, %c0_122] : memref<2x128x128xf32, #tpu.memory_space<vmem>>, vector<1x128x128xf32>
    %108 = vector.shape_cast %107 : vector<1x128x128xf32> to vector<128x128xf32>
    %cst_123 = arith.constant dense<0.000000e+00> : vector<8x128xf32>
    %109 = tpu.matmul %106, %108, %cst_123 {dimension_numbers = #tpu.dot_dimension_numbers<[1], [0], [0], [1], [0, 0, 1, 1], [], []>} : vector<8x128xf32>, vector<128x128xf32>, vector<8x128xf32> -> vector<8x128xf32>
    %c1_124 = arith.constant 1 : index
    %c0_125 = arith.constant 0 : index
    %c0_126 = arith.constant 0 : index
    %110 = vector.load %arg13[%c1_124, %c0_125, %c0_126] : memref<2x1x128xf32, #tpu.memory_space<vmem>>, vector<1x1x128xf32>
    %111 = vector.shape_cast %110 : vector<1x1x128xf32> to vector<1x128xf32>
    %112 = vector.broadcast %111 : vector<1x128xf32> to vector<8x128xf32>
    %113 = arith.addf %109, %112 : vector<8x128xf32>
    %114 = arith.addf %83, %113 : vector<8x128xf32>
    %cst_127 = arith.constant 0.000000e+00 : f32
    %115 = vector.broadcast %cst_127 : f32 to vector<8x128xf32>
    %116 = arith.maximumf %114, %115 : vector<8x128xf32>
    %c0_128 = arith.constant 0 : index
    %c0_129 = arith.constant 0 : index
    %117 = vector.load %arg14[%c0_128, %c0_129] : memref<128x128xf32, #tpu.memory_space<vmem>>, vector<128x128xf32>
    %cst_130 = arith.constant dense<0.000000e+00> : vector<8x128xf32>
    %118 = tpu.matmul %116, %117, %cst_130 {dimension_numbers = #tpu.dot_dimension_numbers<[1], [0], [0], [1], [0, 0, 1, 1], [], []>} : vector<8x128xf32>, vector<128x128xf32>, vector<8x128xf32> -> vector<8x128xf32>
    %c0_131 = arith.constant 0 : index
    %c0_132 = arith.constant 0 : index
    %119 = vector.load %arg15[%c0_131, %c0_132] : memref<1x128xf32, #tpu.memory_space<vmem>>, vector<1x128xf32>
    %120 = vector.broadcast %119 : vector<1x128xf32> to vector<8x128xf32>
    %121 = arith.addf %118, %120 : vector<8x128xf32>
    %c0_133 = arith.constant 0 : index
    %c0_134 = arith.constant 0 : index
    %c0_135 = arith.constant 0 : index
    %122 = vector.load %arg16[%c0_133, %c0_134, %c0_135] : memref<1x8x128xf32, #tpu.memory_space<vmem>>, vector<1x8x128xf32>
    %123 = vector.shape_cast %122 : vector<1x8x128xf32> to vector<8x128xf32>
    %124 = vector.shape_cast %121 : vector<8x128xf32> to vector<1x8x128xf32>
    tpu.vector_store %arg16[%c0_133, %c0_134, %c0_135], %124 {strides = array<i32>} : memref<1x8x128xf32, #tpu.memory_space<vmem>>, vector<1x8x128xf32>,
    return
  }
  func.func @transform_0(%arg0: i32) -> (i32, i32, i32) {
    %c0_i32 = arith.constant 0 : i32
    %c0_i32_0 = arith.constant 0 : i32
    %c0_i32_1 = arith.constant 0 : i32
    return %arg0, %c0_i32, %c0_i32_0 : i32, i32, i32
  }
  func.func @transform_1(%arg0: i32) -> (i32, i32) {
    %c0_i32 = arith.constant 0 : i32
    %c0_i32_0 = arith.constant 0 : i32
    %c0_i32_1 = arith.constant 0 : i32
    return %c0_i32, %c0_i32_0 : i32, i32
  }
  func.func @transform_2(%arg0: i32) -> (i32, i32) {
    %c0_i32 = arith.constant 0 : i32
    %c0_i32_0 = arith.constant 0 : i32
    %c0_i32_1 = arith.constant 0 : i32
    return %c0_i32, %c0_i32_0 : i32, i32
  }
  func.func @transform_3(%arg0: i32) -> (i32, i32) {
    %c0_i32 = arith.constant 0 : i32
    %c0_i32_0 = arith.constant 0 : i32
    %c0_i32_1 = arith.constant 0 : i32
    return %c0_i32, %c0_i32_0 : i32, i32
  }
  func.func @transform_4(%arg0: i32) -> (i32, i32) {
    %c0_i32 = arith.constant 0 : i32
    %c0_i32_0 = arith.constant 0 : i32
    %c0_i32_1 = arith.constant 0 : i32
    return %c0_i32, %c0_i32_0 : i32, i32
  }
  func.func @transform_5(%arg0: i32) -> (i32, i32) {
    %c0_i32 = arith.constant 0 : i32
    %c0_i32_0 = arith.constant 0 : i32
    %c0_i32_1 = arith.constant 0 : i32
    return %c0_i32, %c0_i32_0 : i32, i32
  }
  func.func @transform_6(%arg0: i32) -> (i32, i32) {
    %c0_i32 = arith.constant 0 : i32
    %c0_i32_0 = arith.constant 0 : i32
    %c0_i32_1 = arith.constant 0 : i32
    return %c0_i32, %c0_i32_0 : i32, i32
  }
  func.func @transform_7(%arg0: i32) -> (i32, i32, i32) {
    %c0_i32 = arith.constant 0 : i32
    %c0_i32_0 = arith.constant 0 : i32
    %c0_i32_1 = arith.constant 0 : i32
    %c0_i32_2 = arith.constant 0 : i32
    return %c0_i32, %c0_i32_0, %c0_i32_1 : i32, i32, i32
  }
  func.func @transform_8(%arg0: i32) -> (i32, i32) {
    %c0_i32 = arith.constant 0 : i32
    %c0_i32_0 = arith.constant 0 : i32
    %c0_i32_1 = arith.constant 0 : i32
    return %c0_i32, %c0_i32_0 : i32, i32
  }
  func.func @transform_9(%arg0: i32) -> (i32, i32, i32, i32) {
    %c0_i32 = arith.constant 0 : i32
    %c0_i32_0 = arith.constant 0 : i32
    %c0_i32_1 = arith.constant 0 : i32
    %c0_i32_2 = arith.constant 0 : i32
    %c0_i32_3 = arith.constant 0 : i32
    return %c0_i32, %c0_i32_0, %c0_i32_1, %c0_i32_2 : i32, i32, i32, i32
  }
  func.func @transform_10(%arg0: i32) -> (i32, i32, i32) {
    %c0_i32 = arith.constant 0 : i32
    %c0_i32_0 = arith.constant 0 : i32
    %c0_i32_1 = arith.constant 0 : i32
    %c0_i32_2 = arith.constant 0 : i32
    return %c0_i32, %c0_i32_0, %c0_i32_1 : i32, i32, i32
  }
  func.func @transform_11(%arg0: i32) -> (i32, i32, i32) {
    %c0_i32 = arith.constant 0 : i32
    %c0_i32_0 = arith.constant 0 : i32
    %c0_i32_1 = arith.constant 0 : i32
    %c0_i32_2 = arith.constant 0 : i32
    return %c0_i32, %c0_i32_0, %c0_i32_1 : i32, i32, i32
  }
  func.func @transform_12(%arg0: i32) -> (i32, i32, i32) {
    %c0_i32 = arith.constant 0 : i32
    %c0_i32_0 = arith.constant 0 : i32
    %c0_i32_1 = arith.constant 0 : i32
    %c0_i32_2 = arith.constant 0 : i32
    return %c0_i32, %c0_i32_0, %c0_i32_1 : i32, i32, i32
  }
  func.func @transform_13(%arg0: i32) -> (i32, i32) {
    %c0_i32 = arith.constant 0 : i32
    %c0_i32_0 = arith.constant 0 : i32
    %c0_i32_1 = arith.constant 0 : i32
    return %c0_i32, %c0_i32_0 : i32, i32
  }
  func.func @transform_14(%arg0: i32) -> (i32, i32) {
    %c0_i32 = arith.constant 0 : i32
    %c0_i32_0 = arith.constant 0 : i32
    %c0_i32_1 = arith.constant 0 : i32
    return %c0_i32, %c0_i32_0 : i32, i32
  }
  func.func @transform_15(%arg0: i32) -> (i32, i32, i32) {
    %c0_i32 = arith.constant 0 : i32
    %c0_i32_0 = arith.constant 0 : i32
    %c0_i32_1 = arith.constant 0 : i32
    return %arg0, %c0_i32, %c0_i32_0 : i32, i32, i32
  }
}

</mosaic_0001>

<llo_original>
// kernel: unet_encoder_forward.1
$region0: #{unet_encoder_forward.1}
  #allocation0 [shape = 'u32[]', space=smem, size = 0x4, offset = 0x4, fixed_abs, tag = 'smem constant byte address 0x4 - core index']
  #allocation1 [shape = 'u32[144,128]{1,0:T(1,128)}', space=vmem, size = 0x12000, scoped, tag = 'internal scratch']
  #allocation2 [shape = 'f32[9,128]{1,0:T(8,128)}', space=vmem, size = 0x2000, scoped, tag = 'scratch operand']
  #allocation3 [shape = 'f32[10,128]{1,0:T(8,128)}', space=vmem, size = 0x2000, scoped, tag = 'scratch operand']
  %s0 = inlined_call_operand.vmem [shape: f32[2,10,4], index: 0, kind: input, shape index: {}]
  %s1 = inlined_call_operand.vmem [shape: f32[4,128], index: 1, kind: input, shape index: {}]
  %s2 = inlined_call_operand.vmem [shape: f32[4,128], index: 2, kind: input, shape index: {}]
  %s3 = inlined_call_operand.vmem [shape: f32[1,128], index: 3, kind: input, shape index: {}]
  %s4 = inlined_call_operand.vmem [shape: f32[128,128], index: 4, kind: input, shape index: {}]
  %s5 = inlined_call_operand.vmem [shape: f32[128,128], index: 5, kind: input, shape index: {}]
  %s6 = inlined_call_operand.vmem [shape: f32[1,128], index: 6, kind: input, shape index: {}]
  %s7 = inlined_call_operand.vmem [shape: f32[3,128,128], index: 7, kind: input, shape index: {}]
  %s8 = inlined_call_operand.vmem [shape: f32[1,128], index: 8, kind: input, shape index: {}]
  %s9 = inlined_call_operand.vmem [shape: f32[2,3,128,128], index: 9, kind: input, shape index: {}]
  %s10 = inlined_call_operand.vmem [shape: f32[2,1,128], index: 10, kind: input, shape index: {}]
  %s11 = inlined_call_operand.vmem [shape: f32[2,128,128], index: 11, kind: input, shape index: {}]
  %s12 = inlined_call_operand.vmem [shape: f32[2,1,128], index: 12, kind: input, shape index: {}]
  %s13 = inlined_call_operand.vmem [shape: f32[128,128], index: 13, kind: input, shape index: {}]
  %s14 = inlined_call_operand.vmem [shape: f32[1,128], index: 14, kind: input, shape index: {}]
  %s15 = inlined_call_operand.vmem [shape: f32[2,8,128], index: 15, kind: output, shape index: {}]
  %s16 = sld [smem:[#allocation0]]
  $region93: #{unet_encoder_forward.1} parent=0
    _
  %s18 = ssub.s32 1, %s16
  %s19 = scalar_select 0, %s18, %s16
  loop: start=0, step=1, limit=4
  $region2: #{unet_encoder_forward.1} parent=0 // loop_pre_header
    _
  $region3: #{unet_encoder_forward.1} parent=0 // loop_header
    %s21 = sphi 0, %s25
    %p22 = scmp.ge.s32.totalorder %s21, 4
    %s31 = sphi 0, %s33
    %s34 = sphi 0, %s31
    %s35 = sphi 0, %s34
    %s51 = sphi 0, %s35
    %s55 = sphi 0, %s55
    %s57 = sphi 0, %s55
    %s58 = sphi 0, %s57
    %s72 = sphi 0, %s58
    %s76 = sphi 0, %s76
    %s78 = sphi 0, %s76
    %s79 = sphi 0, %s78
    %s93 = sphi 0, %s79
    %s97 = sphi 0, %s97
    %s99 = sphi 0, %s97
    %s100 = sphi 0, %s99
    %s114 = sphi 0, %s100
    %s118 = sphi 0, %s118
    %s120 = sphi 0, %s118
    %s121 = sphi 0, %s120
    %s135 = sphi 0, %s121
    %s139 = sphi 0, %s139
    %s141 = sphi 0, %s139
    %s142 = sphi 0, %s141
    %s156 = sphi 0, %s142
    %s160 = sphi 0, %s160
    %s162 = sphi 0, %s160
    %s163 = sphi 0, %s162
    %s177 = sphi 0, %s163
    %s181 = sphi 0, %s181
    %s183 = sphi 0, %s181
    %s184 = sphi 0, %s183
    %s198 = sphi 0, %s184
    %s202 = sphi 0, %s202
    %s204 = sphi 0, %s202
    %s205 = sphi 0, %s204
    %s219 = sphi 0, %s205
    %s223 = sphi 0, %s223
    %s225 = sphi 0, %s223
    %s226 = sphi 0, %s225
    %s240 = sphi 0, %s226
    %s244 = sphi 0, %s244
    %s246 = sphi 0, %s244
    %s247 = sphi 0, %s246
    %s261 = sphi 0, %s247
    %s265 = sphi 0, %s265
    %s267 = sphi 0, %s265
    %s268 = sphi 0, %s267
    %s282 = sphi 0, %s268
    %s286 = sphi 0, %s286
    %s288 = sphi 0, %s286
    %s289 = sphi 0, %s288
    %s303 = sphi 0, %s289
    %s307 = sphi 0, %s307
    %s309 = sphi 0, %s307
    %s310 = sphi 0, %s309
    %s324 = sphi 0, %s310
    %s328 = sphi 0, %s328
    %s330 = sphi 0, %s328
    %s331 = sphi 0, %s330
    %s345 = sphi 0, %s331
    %s351 = sphi 0, %s353
    %s354 = sphi 0, %s351
    %s355 = sphi 0, %s354
    %s371 = sphi 0, %s355
  $region4: #{unet_encoder_forward.1} parent=0 // loop_header_branch
    %24 = sbr.rel (%p22) target = $region8
  $region5: #{unet_encoder_forward.1} parent=0 // loop_body
    %s26 = ssub.s32 %s21, 1
    %s27 = ssub.s32 %s21, 2
    %s28 = sadd.s32 %s21, 1
    %s29 = ssub.s32 %s21, %s28
    %p30 = scmp.eq.s32.totalorder %s29, 0
    %s32 = sadd.s32 %s31, 1
    %s33 = scalar_select %p30, %s31, %s32
    %p36 = pneg %p30
    %p37 = scmp.eq.s32.totalorder %s21, 1
    %p38 = por %p36, %p37
    %p39 = scmp.ne.s32.totalorder %s31, %s34
    %p40 = scmp.eq.s32.totalorder %s21, 0
    %p41 = por %p39, %p40
    %p42 = scmp.ne.s32.totalorder %s31, %s34
    %p43 = scmp.eq.s32.totalorder %s26, 1
    %p44 = por %p42, %p43
    %p45 = scmp.ne.s32.totalorder %s34, %s35
    %p46 = scmp.eq.s32.totalorder %s26, 0
    %p47 = por %p45, %p46
    %p48 = scmp.ne.s32.totalorder %s34, %s35
    %p49 = scmp.eq.s32.totalorder %s27, 1
    %p50 = por %p48, %p49
    %p52 = scmp.ne.s32.totalorder %s35, %s51
    %p53 = scmp.eq.s32.totalorder %s27, 0
    %p54 = por %p52, %p53
    %s56 = sadd.s32 %s55, 1
    %p59 = scmp.eq.s32.totalorder %s21, 1
    %p60 = scmp.ne.s32.totalorder %s55, %s57
    %p61 = scmp.eq.s32.totalorder %s21, 0
    %p62 = por %p60, %p61
    %p63 = scmp.ne.s32.totalorder %s55, %s57
    %p64 = scmp.eq.s32.totalorder %s26, 1
    %p65 = por %p63, %p64
    %p66 = scmp.ne.s32.totalorder %s57, %s58
    %p67 = scmp.eq.s32.totalorder %s26, 0
    %p68 = por %p66, %p67
    %p69 = scmp.ne.s32.totalorder %s57, %s58
    %p70 = scmp.eq.s32.totalorder %s27, 1
    %p71 = por %p69, %p70
    %p73 = scmp.ne.s32.totalorder %s58, %s72
    %p74 = scmp.eq.s32.totalorder %s27, 0
    %p75 = por %p73, %p74
    %s77 = sadd.s32 %s76, 1
    %p80 = scmp.eq.s32.totalorder %s21, 1
    %p81 = scmp.ne.s32.totalorder %s76, %s78
    %p82 = scmp.eq.s32.totalorder %s21, 0
    %p83 = por %p81, %p82
    %p84 = scmp.ne.s32.totalorder %s76, %s78
    %p85 = scmp.eq.s32.totalorder %s26, 1
    %p86 = por %p84, %p85
    %p87 = scmp.ne.s32.totalorder %s78, %s79
    %p88 = scmp.eq.s32.totalorder %s26, 0
    %p89 = por %p87, %p88
    %p90 = scmp.ne.s32.totalorder %s78, %s79
    %p91 = scmp.eq.s32.totalorder %s27, 1
    %p92 = por %p90, %p91
    %p94 = scmp.ne.s32.totalorder %s79, %s93
    %p95 = scmp.eq.s32.totalorder %s27, 0
    %p96 = por %p94, %p95
    %s98 = sadd.s32 %s97, 1
    %p101 = scmp.eq.s32.totalorder %s21, 1
    %p102 = scmp.ne.s32.totalorder %s97, %s99
    %p103 = scmp.eq.s32.totalorder %s21, 0
    %p104 = por %p102, %p103
    %p105 = scmp.ne.s32.totalorder %s97, %s99
    %p106 = scmp.eq.s32.totalorder %s26, 1
    %p107 = por %p105, %p106
    %p108 = scmp.ne.s32.totalorder %s99, %s100
    %p109 = scmp.eq.s32.totalorder %s26, 0
    %p110 = por %p108, %p109
    %p111 = scmp.ne.s32.totalorder %s99, %s100
    %p112 = scmp.eq.s32.totalorder %s27, 1
    %p113 = por %p111, %p112
    %p115 = scmp.ne.s32.totalorder %s100, %s114
    %p116 = scmp.eq.s32.totalorder %s27, 0
    %p117 = por %p115, %p116
    %s119 = sadd.s32 %s118, 1
    %p122 = scmp.eq.s32.totalorder %s21, 1
    %p123 = scmp.ne.s32.totalorder %s118, %s120
    %p124 = scmp.eq.s32.totalorder %s21, 0
    %p125 = por %p123, %p124
    %p126 = scmp.ne.s32.totalorder %s118, %s120
    %p127 = scmp.eq.s32.totalorder %s26, 1
    %p128 = por %p126, %p127
    %p129 = scmp.ne.s32.totalorder %s120, %s121
    %p130 = scmp.eq.s32.totalorder %s26, 0
    %p131 = por %p129, %p130
    %p132 = scmp.ne.s32.totalorder %s120, %s121
    %p133 = scmp.eq.s32.totalorder %s27, 1
    %p134 = por %p132, %p133
    %p136 = scmp.ne.s32.totalorder %s121, %s135
    %p137 = scmp.eq.s32.totalorder %s27, 0
    %p138 = por %p136, %p137
    %s140 = sadd.s32 %s139, 1
    %p143 = scmp.eq.s32.totalorder %s21, 1
    %p144 = scmp.ne.s32.totalorder %s139, %s141
    %p145 = scmp.eq.s32.totalorder %s21, 0
    %p146 = por %p144, %p145
    %p147 = scmp.ne.s32.totalorder %s139, %s141
    %p148 = scmp.eq.s32.totalorder %s26, 1
    %p149 = por %p147, %p148
    %p150 = scmp.ne.s32.totalorder %s141, %s142
    %p151 = scmp.eq.s32.totalorder %s26, 0
    %p152 = por %p150, %p151
    %p153 = scmp.ne.s32.totalorder %s141, %s142
    %p154 = scmp.eq.s32.totalorder %s27, 1
    %p155 = por %p153, %p154
    %p157 = scmp.ne.s32.totalorder %s142, %s156
    %p158 = scmp.eq.s32.totalorder %s27, 0
    %p159 = por %p157, %p158
    %s161 = sadd.s32 %s160, 1
    %p164 = scmp.eq.s32.totalorder %s21, 1
    %p165 = scmp.ne.s32.totalorder %s160, %s162
    %p166 = scmp.eq.s32.totalorder %s21, 0
    %p167 = por %p165, %p166
    %p168 = scmp.ne.s32.totalorder %s160, %s162
    %p169 = scmp.eq.s32.totalorder %s26, 1
    %p170 = por %p168, %p169
    %p171 = scmp.ne.s32.totalorder %s162, %s163
    %p172 = scmp.eq.s32.totalorder %s26, 0
    %p173 = por %p171, %p172
    %p174 = scmp.ne.s32.totalorder %s162, %s163
    %p175 = scmp.eq.s32.totalorder %s27, 1
    %p176 = por %p174, %p175
    %p178 = scmp.ne.s32.totalorder %s163, %s177
    %p179 = scmp.eq.s32.totalorder %s27, 0
    %p180 = por %p178, %p179
    %s182 = sadd.s32 %s181, 1
    %p185 = scmp.eq.s32.totalorder %s21, 1
    %p186 = scmp.ne.s32.totalorder %s181, %s183
    %p187 = scmp.eq.s32.totalorder %s21, 0
    %p188 = por %p186, %p187
    %p189 = scmp.ne.s32.totalorder %s181, %s183
    %p190 = scmp.eq.s32.totalorder %s26, 1
    %p191 = por %p189, %p190
    %p192 = scmp.ne.s32.totalorder %s183, %s184
    %p193 = scmp.eq.s32.totalorder %s26, 0
    %p194 = por %p192, %p193
    %p195 = scmp.ne.s32.totalorder %s183, %s184
    %p196 = scmp.eq.s32.totalorder %s27, 1
    %p197 = por %p195, %p196
    %p199 = scmp.ne.s32.totalorder %s184, %s198
    %p200 = scmp.eq.s32.totalorder %s27, 0
    %p201 = por %p199, %p200
    %s203 = sadd.s32 %s202, 1
    %p206 = scmp.eq.s32.totalorder %s21, 1
    %p207 = scmp.ne.s32.totalorder %s202, %s204
    %p208 = scmp.eq.s32.totalorder %s21, 0
    %p209 = por %p207, %p208
    %p210 = scmp.ne.s32.totalorder %s202, %s204
    %p211 = scmp.eq.s32.totalorder %s26, 1
    %p212 = por %p210, %p211
    %p213 = scmp.ne.s32.totalorder %s204, %s205
    %p214 = scmp.eq.s32.totalorder %s26, 0
    %p215 = por %p213, %p214
    %p216 = scmp.ne.s32.totalorder %s204, %s205
    %p217 = scmp.eq.s32.totalorder %s27, 1
    %p218 = por %p216, %p217
    %p220 = scmp.ne.s32.totalorder %s205, %s219
    %p221 = scmp.eq.s32.totalorder %s27, 0
    %p222 = por %p220, %p221
    %s224 = sadd.s32 %s223, 1
    %p227 = scmp.eq.s32.totalorder %s21, 1
    %p228 = scmp.ne.s32.totalorder %s223, %s225
    %p229 = scmp.eq.s32.totalorder %s21, 0
    %p230 = por %p228, %p229
    %p231 = scmp.ne.s32.totalorder %s223, %s225
    %p232 = scmp.eq.s32.totalorder %s26, 1
    %p233 = por %p231, %p232
    %p234 = scmp.ne.s32.totalorder %s225, %s226
    %p235 = scmp.eq.s32.totalorder %s26, 0
    %p236 = por %p234, %p235
    %p237 = scmp.ne.s32.totalorder %s225, %s226
    %p238 = scmp.eq.s32.totalorder %s27, 1
    %p239 = por %p237, %p238
    %p241 = scmp.ne.s32.totalorder %s226, %s240
    %p242 = scmp.eq.s32.totalorder %s27, 0
    %p243 = por %p241, %p242
    %s245 = sadd.s32 %s244, 1
    %p248 = scmp.eq.s32.totalorder %s21, 1
    %p249 = scmp.ne.s32.totalorder %s244, %s246
    %p250 = scmp.eq.s32.totalorder %s21, 0
    %p251 = por %p249, %p250
    %p252 = scmp.ne.s32.totalorder %s244, %s246
    %p253 = scmp.eq.s32.totalorder %s26, 1
    %p254 = por %p252, %p253
    %p255 = scmp.ne.s32.totalorder %s246, %s247
    %p256 = scmp.eq.s32.totalorder %s26, 0
    %p257 = por %p255, %p256
    %p258 = scmp.ne.s32.totalorder %s246, %s247
    %p259 = scmp.eq.s32.totalorder %s27, 1
    %p260 = por %p258, %p259
    %p262 = scmp.ne.s32.totalorder %s247, %s261
    %p263 = scmp.eq.s32.totalorder %s27, 0
    %p264 = por %p262, %p263
    %s266 = sadd.s32 %s265, 1
    %p269 = scmp.eq.s32.totalorder %s21, 1
    %p270 = scmp.ne.s32.totalorder %s265, %s267
    %p271 = scmp.eq.s32.totalorder %s21, 0
    %p272 = por %p270, %p271
    %p273 = scmp.ne.s32.totalorder %s265, %s267
    %p274 = scmp.eq.s32.totalorder %s26, 1
    %p275 = por %p273, %p274
    %p276 = scmp.ne.s32.totalorder %s267, %s268
    %p277 = scmp.eq.s32.totalorder %s26, 0
    %p278 = por %p276, %p277
    %p279 = scmp.ne.s32.totalorder %s267, %s268
    %p280 = scmp.eq.s32.totalorder %s27, 1
    %p281 = por %p279, %p280
    %p283 = scmp.ne.s32.totalorder %s268, %s282
    %p284 = scmp.eq.s32.totalorder %s27, 0
    %p285 = por %p283, %p284
    %s287 = sadd.s32 %s286, 1
    %p290 = scmp.eq.s32.totalorder %s21, 1
    %p291 = scmp.ne.s32.totalorder %s286, %s288
    %p292 = scmp.eq.s32.totalorder %s21, 0
    %p293 = por %p291, %p292
    %p294 = scmp.ne.s32.totalorder %s286, %s288
    %p295 = scmp.eq.s32.totalorder %s26, 1
    %p296 = por %p294, %p295
    %p297 = scmp.ne.s32.totalorder %s288, %s289
    %p298 = scmp.eq.s32.totalorder %s26, 0
    %p299 = por %p297, %p298
    %p300 = scmp.ne.s32.totalorder %s288, %s289
    %p301 = scmp.eq.s32.totalorder %s27, 1
    %p302 = por %p300, %p301
    %p304 = scmp.ne.s32.totalorder %s289, %s303
    %p305 = scmp.eq.s32.totalorder %s27, 0
    %p306 = por %p304, %p305
    %s308 = sadd.s32 %s307, 1
    %p311 = scmp.eq.s32.totalorder %s21, 1
    %p312 = scmp.ne.s32.totalorder %s307, %s309
    %p313 = scmp.eq.s32.totalorder %s21, 0
    %p314 = por %p312, %p313
    %p315 = scmp.ne.s32.totalorder %s307, %s309
    %p316 = scmp.eq.s32.totalorder %s26, 1
    %p317 = por %p315, %p316
    %p318 = scmp.ne.s32.totalorder %s309, %s310
    %p319 = scmp.eq.s32.totalorder %s26, 0
    %p320 = por %p318, %p319
    %p321 = scmp.ne.s32.totalorder %s309, %s310
    %p322 = scmp.eq.s32.totalorder %s27, 1
    %p323 = por %p321, %p322
    %p325 = scmp.ne.s32.totalorder %s310, %s324
    %p326 = scmp.eq.s32.totalorder %s27, 0
    %p327 = por %p325, %p326
    %s329 = sadd.s32 %s328, 1
    %p332 = scmp.eq.s32.totalorder %s21, 1
    %p333 = scmp.ne.s32.totalorder %s328, %s330
    %p334 = scmp.eq.s32.totalorder %s21, 0
    %p335 = por %p333, %p334
    %p336 = scmp.ne.s32.totalorder %s328, %s330
    %p337 = scmp.eq.s32.totalorder %s26, 1
    %p338 = por %p336, %p337
    %p339 = scmp.ne.s32.totalorder %s330, %s331
    %p340 = scmp.eq.s32.totalorder %s26, 0
    %p341 = por %p339, %p340
    %p342 = scmp.ne.s32.totalorder %s330, %s331
    %p343 = scmp.eq.s32.totalorder %s27, 1
    %p344 = por %p342, %p343
    %p346 = scmp.ne.s32.totalorder %s331, %s345
    %p347 = scmp.eq.s32.totalorder %s27, 0
    %p348 = por %p346, %p347
    %s349 = ssub.s32 %s21, %s28
    %p350 = scmp.eq.s32.totalorder %s349, 0
    %s352 = sadd.s32 %s351, 1
    %s353 = scalar_select %p350, %s351, %s352
    %p356 = pneg %p350
    %p357 = scmp.eq.s32.totalorder %s21, 1
    %p358 = por %p356, %p357
    %p359 = scmp.ne.s32.totalorder %s351, %s354
    %p360 = scmp.eq.s32.totalorder %s21, 0
    %p361 = por %p359, %p360
    %p362 = scmp.ne.s32.totalorder %s351, %s354
    %p363 = scmp.eq.s32.totalorder %s26, 1
    %p364 = por %p362, %p363
    %p365 = scmp.ne.s32.totalorder %s354, %s355
    %p366 = scmp.eq.s32.totalorder %s26, 0
    %p367 = por %p365, %p366
    %p368 = scmp.ne.s32.totalorder %s354, %s355
    %p369 = scmp.eq.s32.totalorder %s27, 1
    %p370 = por %p368, %p369
    %p372 = scmp.ne.s32.totalorder %s355, %s371
    %p373 = scmp.eq.s32.totalorder %s27, 0
    %p374 = por %p372, %p373
    %p375 = scmp.le.s32.totalorder 1, %s21
    %p376 = scmp.lt.s32.totalorder %s21, 3
    %p377 = pnand %p375, %p376
    %p378 = pneg %p377
    // Predicated region
    $region9: #{unet_encoder_forward.1} parent=5 // pred_check
      _
    $region10: #{unet_encoder_forward.1} parent=5 // pred_check_branch
      %380 = sbr.rel (%p377) target = $region12
    $region11: #{unet_encoder_forward.1} parent=5 // pred_region
      %s381 = ssub.s32 %s21, 1
      // Predicated region
      $region13: #{unet_encoder_forward.1} parent=11 // pred_check
        %p382 = pneg %p68
      $region14: #{unet_encoder_forward.1} parent=11 // pred_check_branch
        %384 = sbr.rel (%p382) target = $region16
      $region15: #{unet_encoder_forward.1} parent=11 // pred_region
        _
      $region16: #{unet_encoder_forward.1} parent=11 // pred_fallthru
        _
      // Predicated region
      $region17: #{unet_encoder_forward.1} parent=11 // pred_check
        %p385 = pneg %p89
      $region18: #{unet_encoder_forward.1} parent=11 // pred_check_branch
        %387 = sbr.rel (%p385) target = $region20
      $region19: #{unet_encoder_forward.1} parent=11 // pred_region
        _
      $region20: #{unet_encoder_forward.1} parent=11 // pred_fallthru
        _
      // Predicated region
      $region21: #{unet_encoder_forward.1} parent=11 // pred_check
        %p388 = pneg %p110
      $region22: #{unet_encoder_forward.1} parent=11 // pred_check_branch
        %390 = sbr.rel (%p388) target = $region24
      $region23: #{unet_encoder_forward.1} parent=11 // pred_region
        _
      $region24: #{unet_encoder_forward.1} parent=11 // pred_fallthru
        _
      // Predicated region
      $region25: #{unet_encoder_forward.1} parent=11 // pred_check
        %p391 = pneg %p131
      $region26: #{unet_encoder_forward.1} parent=11 // pred_check_branch
        %393 = sbr.rel (%p391) target = $region28
      $region27: #{unet_encoder_forward.1} parent=11 // pred_region
        _
      $region28: #{unet_encoder_forward.1} parent=11 // pred_fallthru
        _
      // Predicated region
      $region29: #{unet_encoder_forward.1} parent=11 // pred_check
        %p394 = pneg %p152
      $region30: #{unet_encoder_forward.1} parent=11 // pred_check_branch
        %396 = sbr.rel (%p394) target = $region32
      $region31: #{unet_encoder_forward.1} parent=11 // pred_region
        _
      $region32: #{unet_encoder_forward.1} parent=11 // pred_fallthru
        _
      // Predicated region
      $region33: #{unet_encoder_forward.1} parent=11 // pred_check
        %p397 = pneg %p173
      $region34: #{unet_encoder_forward.1} parent=11 // pred_check_branch
        %399 = sbr.rel (%p397) target = $region36
      $region35: #{unet_encoder_forward.1} parent=11 // pred_region
        _
      $region36: #{unet_encoder_forward.1} parent=11 // pred_fallthru
        _
      // Predicated region
      $region37: #{unet_encoder_forward.1} parent=11 // pred_check
        %p400 = pneg %p194
      $region38: #{unet_encoder_forward.1} parent=11 // pred_check_branch
        %402 = sbr.rel (%p400) target = $region40
      $region39: #{unet_encoder_forward.1} parent=11 // pred_region
        _
      $region40: #{unet_encoder_forward.1} parent=11 // pred_fallthru
        _
      // Predicated region
      $region41: #{unet_encoder_forward.1} parent=11 // pred_check
        %p403 = pneg %p215
      $region42: #{unet_encoder_forward.1} parent=11 // pred_check_branch
        %405 = sbr.rel (%p403) target = $region44
      $region43: #{unet_encoder_forward.1} parent=11 // pred_region
        _
      $region44: #{unet_encoder_forward.1} parent=11 // pred_fallthru
        _
      // Predicated region
      $region45: #{unet_encoder_forward.1} parent=11 // pred_check
        %p406 = pneg %p236
      $region46: #{unet_encoder_forward.1} parent=11 // pred_check_branch
        %408 = sbr.rel (%p406) target = $region48
      $region47: #{unet_encoder_forward.1} parent=11 // pred_region
        _
      $region48: #{unet_encoder_forward.1} parent=11 // pred_fallthru
        _
      // Predicated region
      $region49: #{unet_encoder_forward.1} parent=11 // pred_check
        %p409 = pneg %p257
      $region50: #{unet_encoder_forward.1} parent=11 // pred_check_branch
        %411 = sbr.rel (%p409) target = $region52
      $region51: #{unet_encoder_forward.1} parent=11 // pred_region
        _
      $region52: #{unet_encoder_forward.1} parent=11 // pred_fallthru
        _
      // Predicated region
      $region53: #{unet_encoder_forward.1} parent=11 // pred_check
        %p412 = pneg %p278
      $region54: #{unet_encoder_forward.1} parent=11 // pred_check_branch
        %414 = sbr.rel (%p412) target = $region56
      $region55: #{unet_encoder_forward.1} parent=11 // pred_region
        _
      $region56: #{unet_encoder_forward.1} parent=11 // pred_fallthru
        _
      // Predicated region
      $region57: #{unet_encoder_forward.1} parent=11 // pred_check
        %p415 = pneg %p299
      $region58: #{unet_encoder_forward.1} parent=11 // pred_check_branch
        %417 = sbr.rel (%p415) target = $region60
      $region59: #{unet_encoder_forward.1} parent=11 // pred_region
        _
      $region60: #{unet_encoder_forward.1} parent=11 // pred_fallthru
        _
      // Predicated region
      $region61: #{unet_encoder_forward.1} parent=11 // pred_check
        %p418 = pneg %p320
      $region62: #{unet_encoder_forward.1} parent=11 // pred_check_branch
        %420 = sbr.rel (%p418) target = $region64
      $region63: #{unet_encoder_forward.1} parent=11 // pred_region
        _
      $region64: #{unet_encoder_forward.1} parent=11 // pred_fallthru
        _
      // Predicated region
      $region65: #{unet_encoder_forward.1} parent=11 // pred_check
        %p421 = pneg %p341
      $region66: #{unet_encoder_forward.1} parent=11 // pred_check_branch
        %423 = sbr.rel (%p421) target = $region68
      $region67: #{unet_encoder_forward.1} parent=11 // pred_region
        _
      $region68: #{unet_encoder_forward.1} parent=11 // pred_fallthru
        _
    $region12: #{unet_encoder_forward.1} parent=5 // pred_fallthru
      _
    %p424 = scmp.lt.s32.totalorder %s21, 2
    // Predicated region
    $region69: #{unet_encoder_forward.1} parent=5 // pred_check
      %p425 = pneg %p424
    $region70: #{unet_encoder_forward.1} parent=5 // pred_check_branch
      %427 = sbr.rel (%p425) target = $region72
    $region71: #{unet_encoder_forward.1} parent=5 // pred_region
      // Predicated region
      $region73: #{unet_encoder_forward.1} parent=71 // pred_check
        %p428 = pneg %p41
      $region74: #{unet_encoder_forward.1} parent=71 // pred_check_branch
        %430 = sbr.rel (%p428) target = $region76
      $region75: #{unet_encoder_forward.1} parent=71 // pred_region
        %p431 = scmp.lt.s32.totalorder %s21, 1
        %s432 = scalar_select %p431, %s21, 1
        %s433 = smul.addr %s432, 2
        %s434 = smul.addr %s433, 8
        %s435 = scalar_lea.vmem %s0, %s434
      $region76: #{unet_encoder_forward.1} parent=71 // pred_fallthru
        _
    $region72: #{unet_encoder_forward.1} parent=5 // pred_fallthru
      _
    %p436 = scmp.le.s32.totalorder 1, %s21
    %p437 = scmp.lt.s32.totalorder %s21, 3
    %p438 = pnand %p436, %p437
    %p439 = pneg %p438
    // Predicated region
    $region77: #{unet_encoder_forward.1} parent=5 // pred_check
      _
    $region78: #{unet_encoder_forward.1} parent=5 // pred_check_branch
      %441 = sbr.rel (%p438) target = $region80
    $region79: #{unet_encoder_forward.1} parent=5 // pred_region
      %s442 = ssub.s32 %s21, 1
      %p443 = scmp.lt.s32.totalorder %s26, 1
      %s444 = scalar_select %p443, %s26, 1
      %s445 = smul.addr %s444, 2
      %s446 = smul.addr %s445, 8
      %s447 = scalar_lea.vmem %s0, %s446
      %p448 = pneg %p47
      %p449 = pneg %p44
      %p450 = pneg %p68
      %p451 = pneg %p65
      %p452 = pneg %p89
      %p453 = pneg %p86
      %p454 = pneg %p110
      %p455 = pneg %p107
      %p456 = pneg %p131
      %p457 = pneg %p128
      %p458 = pneg %p152
      %p459 = pneg %p149
      %p460 = pneg %p173
      %p461 = pneg %p170
      %p462 = pneg %p194
      %p463 = pneg %p191
      %p464 = pneg %p215
      %p465 = pneg %p212
      %p466 = pneg %p236
      %p467 = pneg %p233
      %p468 = pneg %p257
      %p469 = pneg %p254
      %p470 = pneg %p278
      %p471 = pneg %p275
      %p472 = pneg %p299
      %p473 = pneg %p296
      %p474 = pneg %p320
      %p475 = pneg %p317
      %p476 = pneg %p341
      %p477 = pneg %p338
      %p478 = pneg %p367
      %p479 = pneg %p364
      %p480 = scmp.lt.s32.totalorder %s26, 1
      %s481 = scalar_select %p480, %s26, 1
      %s482 = smul.addr %s481, 8
      %s483 = scalar_lea.vmem %s15, %s482
      %p484 = scmp.lt.s32.totalorder %s26, 1
      %s485 = scalar_select %p484, %s26, 1
      %s486 = smul.addr %s485, 2
      %s487 = smul.addr %s486, 8
      %s488 = scalar_lea.vmem %s0, %s487
      %p489 = scmp.lt.s32.totalorder %s26, 1
      %s490 = scalar_select %p489, %s26, 1
      %s491 = smul.addr %s490, 8
      %s492 = scalar_lea.vmem %s15, %s491
      %v493 = vld [vmem:[%s488] sm:$0xff]
      %v494 = vld [vmem:[%s488 + $0x8] sm:$0x1]
      %v495 = vld [vmem:[%s488 + $0x1] sm:$0xff]
      %v496 = vld [vmem:[%s488 + $0x9] sm:$0x1]
      %v497 = vld [vmem:[%s1] sm:$0xf]
      %v498 = vld [vmem:[%s2] sm:$0xf]
      %vm499 = vcmask 31744
      %v501 = vsel %vm499, %v495, 0
      %v504 = vsel %vm499, %v496, 0
      %vm506 = vcmask 1043456
      %v508 = vsel %vm506, %v498, 0
      %510 = vmatprep.subr.mxu0 0.0
      %511 = vmatpush1.msra.mxu0 %v508
      %512 = vmatprep.subr.mxu0 0.0
      %513 = vmatpush1.msra.mxu0 0.0
      %514 = vmatprep.subr.mxu0 0.0
      %515 = vmatpush1.msra.mxu0 0.0
      %516 = vmatprep.subr.mxu0 0.0
      %517 = vmatpush1.msra.mxu0 0.0
      %518 = vmatprep.subr.mxu0 0.0
      %519 = vmatpush1.msra.mxu0 0.0
      %520 = vmatprep.subr.mxu0 0.0
      %521 = vmatpush1.msra.mxu0 0.0
      %522 = vmatprep.subr.mxu0 0.0
      %523 = vmatpush1.msra.mxu0 0.0
      %524 = vmatprep.subr.mxu0 0.0
      %525 = vmatpush1.msra.mxu0 0.0
      %526 = vmatprep.subr.mxu0 0.0
      %527 = vmatpush1.msra.mxu0 0.0
      %528 = vmatprep.subr.mxu0 0.0
      %529 = vmatpush1.msra.mxu0 0.0
      %530 = vmatprep.subr.mxu0 0.0
      %531 = vmatpush1.msra.mxu0 0.0
      %532 = vmatprep.subr.mxu0 0.0
      %533 = vmatpush1.msra.mxu0 0.0
      %534 = vmatprep.subr.mxu0 0.0
      %535 = vmatpush1.msra.mxu0 0.0
      %536 = vmatprep.subr.mxu0 0.0
      %537 = vmatpush1.msra.mxu0 0.0
      %538 = vmatprep.subr.mxu0 0.0
      %539 = vmatpush1.msra.mxu0 0.0
      %540 = vmatprep.subr.mxu0 0.0
      %541 = vmatpush1.msra.mxu0 0.0
      %542 = vmatprep.subr.mxu0 0.0
      %543 = vmatpush1.msra.mxu0 0.0
      %544 = vmatprep.subr.mxu0 0.0
      %545 = vmatpush1.msra.mxu0 0.0
      %546 = vmatprep.subr.mxu0 0.0
      %547 = vmatpush1.msra.mxu0 0.0
      %548 = vmatprep.subr.mxu0 0.0
      %549 = vmatpush1.msra.mxu0 0.0
      %550 = vmatprep.subr.mxu0 0.0
      %551 = vmatpush1.msra.mxu0 0.0
      %552 = vmatprep.subr.mxu0 0.0
      %553 = vmatpush1.msra.mxu0 0.0
      %554 = vmatprep.subr.mxu0 0.0
      %555 = vmatpush1.msra.mxu0 0.0
      %556 = vmatprep.subr.mxu0 0.0
      %557 = vmatpush1.msra.mxu0 0.0
      %558 = vmatprep.subr.mxu0 0.0
      %559 = vmatpush1.msra.mxu0 0.0
      %560 = vmatprep.subr.mxu0 0.0
      %561 = vmatpush1.msra.mxu0 0.0
      %562 = vmatprep.subr.mxu0 0.0
      %563 = vmatpush1.msra.mxu0 0.0
      %564 = vmatprep.subr.mxu0 0.0
      %565 = vmatpush1.msra.mxu0 0.0
      %566 = vmatprep.subr.mxu0 0.0
      %567 = vmatpush1.msra.mxu0 0.0
      %568 = vmatprep.subr.mxu0 0.0
      %569 = vmatpush1.msra.mxu0 0.0
      %570 = vmatprep.subr.mxu0 0.0
      %571 = vmatpush1.msra.mxu0 0.0
      %572 = vmatprep.subr.mxu0 0.0
      %573 = vmatpush1.msra.mxu0 0.0
      %574 = vmatprep.mubr.f32.mxu0 0.0
      %575 = vmatmul.mubr.f32.gmra.mrb[0].mxu0 %v501
      %v576 = vpop.f32.mrb[0].mxu0
      %v577 = vadd.f32 0.0, %v576
      %v578 = vpop.f32.mrb[0].mxu0
      %579 = vmatprep.mubr.f32.mxu0 0.0
      %580 = vmatmul.mubr.f32.gmra.mrb[0].mxu0 %v504
      %v581 = vpop.f32.mrb[0].mxu0
      %v582 = vadd.f32 0.0, %v581
      %v583 = vpop.f32.mrb[0].mxu0
      %584 = vdwg.mxu0
      %v586 = vsel %vm499, %v493, 0
      %v589 = vsel %vm499, %v494, 0
      %v592 = vsel %vm506, %v497, 0
      %594 = vmatprep.subr.mxu0 0.0
      %595 = vmatpush1.msra.mxu0 %v592
      %596 = vmatprep.subr.mxu0 0.0
      %597 = vmatpush1.msra.mxu0 0.0
      %598 = vmatprep.subr.mxu0 0.0
      %599 = vmatpush1.msra.mxu0 0.0
      %600 = vmatprep.subr.mxu0 0.0
      %601 = vmatpush1.msra.mxu0 0.0
      %602 = vmatprep.subr.mxu0 0.0
      %603 = vmatpush1.msra.mxu0 0.0
      %604 = vmatprep.subr.mxu0 0.0
      %605 = vmatpush1.msra.mxu0 0.0
      %606 = vmatprep.subr.mxu0 0.0
      %607 = vmatpush1.msra.mxu0 0.0
      %608 = vmatprep.subr.mxu0 0.0
      %609 = vmatpush1.msra.mxu0 0.0
      %610 = vmatprep.subr.mxu0 0.0
      %611 = vmatpush1.msra.mxu0 0.0
      %612 = vmatprep.subr.mxu0 0.0
      %613 = vmatpush1.msra.mxu0 0.0
      %614 = vmatprep.subr.mxu0 0.0
      %615 = vmatpush1.msra.mxu0 0.0
      %616 = vmatprep.subr.mxu0 0.0
      %617 = vmatpush1.msra.mxu0 0.0
      %618 = vmatprep.subr.mxu0 0.0
      %619 = vmatpush1.msra.mxu0 0.0
      %620 = vmatprep.subr.mxu0 0.0
      %621 = vmatpush1.msra.mxu0 0.0
      %622 = vmatprep.subr.mxu0 0.0
      %623 = vmatpush1.msra.mxu0 0.0
      %624 = vmatprep.subr.mxu0 0.0
      %625 = vmatpush1.msra.mxu0 0.0
      %626 = vmatprep.subr.mxu0 0.0
      %627 = vmatpush1.msra.mxu0 0.0
      %628 = vmatprep.subr.mxu0 0.0
      %629 = vmatpush1.msra.mxu0 0.0
      %630 = vmatprep.subr.mxu0 0.0
      %631 = vmatpush1.msra.mxu0 0.0
      %632 = vmatprep.subr.mxu0 0.0
      %633 = vmatpush1.msra.mxu0 0.0
      %634 = vmatprep.subr.mxu0 0.0
      %635 = vmatpush1.msra.mxu0 0.0
      %636 = vmatprep.subr.mxu0 0.0
      %637 = vmatpush1.msra.mxu0 0.0
      %638 = vmatprep.subr.mxu0 0.0
      %639 = vmatpush1.msra.mxu0 0.0
      %640 = vmatprep.subr.mxu0 0.0
      %641 = vmatpush1.msra.mxu0 0.0
      %642 = vmatprep.subr.mxu0 0.0
      %643 = vmatpush1.msra.mxu0 0.0
      %644 = vmatprep.subr.mxu0 0.0
      %645 = vmatpush1.msra.mxu0 0.0
      %646 = vmatprep.subr.mxu0 0.0
      %647 = vmatpush1.msra.mxu0 0.0
      %648 = vmatprep.subr.mxu0 0.0
      %649 = vmatpush1.msra.mxu0 0.0
      %650 = vmatprep.subr.mxu0 0.0
      %651 = vmatpush1.msra.mxu0 0.0
      %652 = vmatprep.subr.mxu0 0.0
      %653 = vmatpush1.msra.mxu0 0.0
      %654 = vmatprep.subr.mxu0 0.0
      %655 = vmatpush1.msra.mxu0 0.0
      %656 = vmatprep.subr.mxu0 0.0
      %657 = vmatpush1.msra.mxu0 0.0
      %658 = vmatprep.mubr.f32.mxu0 0.0
      %659 = vmatmul.mubr.f32.gmra.mrb[0].mxu0 %v586
      %v660 = vpop.f32.mrb[0].mxu0
      %v661 = vadd.f32 %v577, %v660
      %v662 = vpop.f32.mrb[0].mxu0
      %663 = vmatprep.mubr.f32.mxu0 0.0
      %664 = vmatmul.mubr.f32.gmra.mrb[0].mxu0 %v589
      %v665 = vpop.f32.mrb[0].mxu0
      %v666 = vadd.f32 %v582, %v665
      %v667 = vpop.f32.mrb[0].mxu0
      %668 = vdwg.mxu0
      %v669 = vld [vmem:[%s3] sm:$0x1]
      %v671 = vlaneseq
      %v672 = vshrl.u32 %v671, 7
      %v673 = vsub.s32 0, %v672
      %v674 = vrot.slane %v669, %v673
      %v676 = vadd.f32 %v661, %v674
      %v677 = vadd.f32 %v666, %v674
      %v678 = vmax.f32 %v676, 0.0
      %v679 = vmax.f32 %v677, 0.0
      %680 = vst [vmem:[#allocation2] sm:$0xff] %v678
      %681 = vst [vmem:[#allocation2 + $0x8] sm:$0x1] %v679
      %vm682 = vcmask 516096
      %683 = vst.msk [vmem:[#allocation2 + $0x8] sm:$0x1] %vm682, 0.0
      %vm684 = vcmask 1040896
      %685 = vst.msk [vmem:[#allocation2] sm:$0x1] %vm684, 0.0
      %v686 = vld [vmem:[#allocation2] sm:$0xff]
      %v687 = vld [vmem:[#allocation2 + $0x1] sm:$0xff]
      %v688 = vld [vmem:[%s4] sm:$0xff]
      %v689 = vld [vmem:[%s4 + $0x8] sm:$0xff]
      %v690 = vld [vmem:[%s4 + $0x10] sm:$0xff]
      %v691 = vld [vmem:[%s4 + $0x18] sm:$0xff]
      %v692 = vld [vmem:[%s4 + $0x20] sm:$0xff]
      %v693 = vld [vmem:[%s4 + $0x28] sm:$0xff]
      %v694 = vld [vmem:[%s4 + $0x30] sm:$0xff]
      %v695 = vld [vmem:[%s4 + $0x38] sm:$0xff]
      %v696 = vld [vmem:[%s4 + $0x40] sm:$0xff]
      %v697 = vld [vmem:[%s4 + $0x48] sm:$0xff]
      %v698 = vld [vmem:[%s4 + $0x50] sm:$0xff]
      %v699 = vld [vmem:[%s4 + $0x58] sm:$0xff]
      %v700 = vld [vmem:[%s4 + $0x60] sm:$0xff]
      %v701 = vld [vmem:[%s4 + $0x68] sm:$0xff]
      %v702 = vld [vmem:[%s4 + $0x70] sm:$0xff]
      %v703 = vld [vmem:[%s4 + $0x78] sm:$0xff]
      %v704 = vld [vmem:[%s5] sm:$0xff]
      %v705 = vld [vmem:[%s5 + $0x8] sm:$0xff]
      %v706 = vld [vmem:[%s5 + $0x10] sm:$0xff]
      %v707 = vld [vmem:[%s5 + $0x18] sm:$0xff]
      %v708 = vld [vmem:[%s5 + $0x20] sm:$0xff]
      %v709 = vld [vmem:[%s5 + $0x28] sm:$0xff]
      %v710 = vld [vmem:[%s5 + $0x30] sm:$0xff]
      %v711 = vld [vmem:[%s5 + $0x38] sm:$0xff]
      %v712 = vld [vmem:[%s5 + $0x40] sm:$0xff]
      %v713 = vld [vmem:[%s5 + $0x48] sm:$0xff]
      %v714 = vld [vmem:[%s5 + $0x50] sm:$0xff]
      %v715 = vld [vmem:[%s5 + $0x58] sm:$0xff]
      %v716 = vld [vmem:[%s5 + $0x60] sm:$0xff]
      %v717 = vld [vmem:[%s5 + $0x68] sm:$0xff]
      %v718 = vld [vmem:[%s5 + $0x70] sm:$0xff]
      %v719 = vld [vmem:[%s5 + $0x78] sm:$0xff]
      %720 = vmatprep.subr.mxu0 0.0
      %721 = vmatpush1.msra.mxu0 %v704
      %722 = vmatprep.subr.mxu0 0.0
      %723 = vmatpush1.msra.mxu0 %v705
      %724 = vmatprep.subr.mxu0 0.0
      %725 = vmatpush1.msra.mxu0 %v706
      %726 = vmatprep.subr.mxu0 0.0
      %727 = vmatpush1.msra.mxu0 %v707
      %728 = vmatprep.subr.mxu0 0.0
      %729 = vmatpush1.msra.mxu0 %v708
      %730 = vmatprep.subr.mxu0 0.0
      %731 = vmatpush1.msra.mxu0 %v709
      %732 = vmatprep.subr.mxu0 0.0
      %733 = vmatpush1.msra.mxu0 %v710
      %734 = vmatprep.subr.mxu0 0.0
      %735 = vmatpush1.msra.mxu0 %v711
      %736 = vmatprep.subr.mxu0 0.0
      %737 = vmatpush1.msra.mxu0 %v712
      %738 = vmatprep.subr.mxu0 0.0
      %739 = vmatpush1.msra.mxu0 %v713
      %740 = vmatprep.subr.mxu0 0.0
      %741 = vmatpush1.msra.mxu0 %v714
      %742 = vmatprep.subr.mxu0 0.0
      %743 = vmatpush1.msra.mxu0 %v715
      %744 = vmatprep.subr.mxu0 0.0
      %745 = vmatpush1.msra.mxu0 %v716
      %746 = vmatprep.subr.mxu0 0.0
      %747 = vmatpush1.msra.mxu0 %v717
      %748 = vmatprep.subr.mxu0 0.0
      %749 = vmatpush1.msra.mxu0 %v718
      %750 = vmatprep.subr.mxu0 0.0
      %751 = vmatpush1.msra.mxu0 %v719
      %752 = vmatprep.subr.mxu0 0.0
      %753 = vmatpush1.msra.mxu0 0.0
      %754 = vmatprep.subr.mxu0 0.0
      %755 = vmatpush1.msra.mxu0 0.0
      %756 = vmatprep.subr.mxu0 0.0
      %757 = vmatpush1.msra.mxu0 0.0
      %758 = vmatprep.subr.mxu0 0.0
      %759 = vmatpush1.msra.mxu0 0.0
      %760 = vmatprep.subr.mxu0 0.0
      %761 = vmatpush1.msra.mxu0 0.0
      %762 = vmatprep.subr.mxu0 0.0
      %763 = vmatpush1.msra.mxu0 0.0
      %764 = vmatprep.subr.mxu0 0.0
      %765 = vmatpush1.msra.mxu0 0.0
      %766 = vmatprep.subr.mxu0 0.0
      %767 = vmatpush1.msra.mxu0 0.0
      %768 = vmatprep.subr.mxu0 0.0
      %769 = vmatpush1.msra.mxu0 0.0
      %770 = vmatprep.subr.mxu0 0.0
      %771 = vmatpush1.msra.mxu0 0.0
      %772 = vmatprep.subr.mxu0 0.0
      %773 = vmatpush1.msra.mxu0 0.0
      %774 = vmatprep.subr.mxu0 0.0
      %775 = vmatpush1.msra.mxu0 0.0
      %776 = vmatprep.subr.mxu0 0.0
      %777 = vmatpush1.msra.mxu0 0.0
      %778 = vmatprep.subr.mxu0 0.0
      %779 = vmatpush1.msra.mxu0 0.0
      %780 = vmatprep.subr.mxu0 0.0
      %781 = vmatpush1.msra.mxu0 0.0
      %782 = vmatprep.subr.mxu0 0.0
      %783 = vmatpush1.msra.mxu0 0.0
      %784 = vmatprep.mubr.f32.mxu0 0.0
      %785 = vmatmul.mubr.f32.gmra.mrb[0].mxu0 %v687
      %v786 = vpop.f32.mrb[0].mxu0
      %v787 = vadd.f32 0.0, %v786
      %v788 = vpop.f32.mrb[0].mxu0
      %789 = vdwg.mxu0
      %790 = vmatprep.subr.mxu0 0.0
      %791 = vmatpush1.msra.mxu0 %v688
      %792 = vmatprep.subr.mxu0 0.0
      %793 = vmatpush1.msra.mxu0 %v689
      %794 = vmatprep.subr.mxu0 0.0
      %795 = vmatpush1.msra.mxu0 %v690
      %796 = vmatprep.subr.mxu0 0.0
      %797 = vmatpush1.msra.mxu0 %v691
      %798 = vmatprep.subr.mxu0 0.0
      %799 = vmatpush1.msra.mxu0 %v692
      %800 = vmatprep.subr.mxu0 0.0
      %801 = vmatpush1.msra.mxu0 %v693
      %802 = vmatprep.subr.mxu0 0.0
      %803 = vmatpush1.msra.mxu0 %v694
      %804 = vmatprep.subr.mxu0 0.0
      %805 = vmatpush1.msra.mxu0 %v695
      %806 = vmatprep.subr.mxu0 0.0
      %807 = vmatpush1.msra.mxu0 %v696
      %808 = vmatprep.subr.mxu0 0.0
      %809 = vmatpush1.msra.mxu0 %v697
      %810 = vmatprep.subr.mxu0 0.0
      %811 = vmatpush1.msra.mxu0 %v698
      %812 = vmatprep.subr.mxu0 0.0
      %813 = vmatpush1.msra.mxu0 %v699
      %814 = vmatprep.subr.mxu0 0.0
      %815 = vmatpush1.msra.mxu0 %v700
      %816 = vmatprep.subr.mxu0 0.0
      %817 = vmatpush1.msra.mxu0 %v701
      %818 = vmatprep.subr.mxu0 0.0
      %819 = vmatpush1.msra.mxu0 %v702
      %820 = vmatprep.subr.mxu0 0.0
      %821 = vmatpush1.msra.mxu0 %v703
      %822 = vmatprep.subr.mxu0 0.0
      %823 = vmatpush1.msra.mxu0 0.0
      %824 = vmatprep.subr.mxu0 0.0
      %825 = vmatpush1.msra.mxu0 0.0
      %826 = vmatprep.subr.mxu0 0.0
      %827 = vmatpush1.msra.mxu0 0.0
      %828 = vmatprep.subr.mxu0 0.0
      %829 = vmatpush1.msra.mxu0 0.0
      %830 = vmatprep.subr.mxu0 0.0
      %831 = vmatpush1.msra.mxu0 0.0
      %832 = vmatprep.subr.mxu0 0.0
      %833 = vmatpush1.msra.mxu0 0.0
      %834 = vmatprep.subr.mxu0 0.0
      %835 = vmatpush1.msra.mxu0 0.0
      %836 = vmatprep.subr.mxu0 0.0
      %837 = vmatpush1.msra.mxu0 0.0
      %838 = vmatprep.subr.mxu0 0.0
      %839 = vmatpush1.msra.mxu0 0.0
      %840 = vmatprep.subr.mxu0 0.0
      %841 = vmatpush1.msra.mxu0 0.0
      %842 = vmatprep.subr.mxu0 0.0
      %843 = vmatpush1.msra.mxu0 0.0
      %844 = vmatprep.subr.mxu0 0.0
      %845 = vmatpush1.msra.mxu0 0.0
      %846 = vmatprep.subr.mxu0 0.0
      %847 = vmatpush1.msra.mxu0 0.0
      %848 = vmatprep.subr.mxu0 0.0
      %849 = vmatpush1.msra.mxu0 0.0
      %850 = vmatprep.subr.mxu0 0.0
      %851 = vmatpush1.msra.mxu0 0.0
      %852 = vmatprep.subr.mxu0 0.0
      %853 = vmatpush1.msra.mxu0 0.0
      %854 = vmatprep.mubr.f32.mxu0 0.0
      %855 = vmatmul.mubr.f32.gmra.mrb[0].mxu0 %v686
      %v856 = vpop.f32.mrb[0].mxu0
      %v857 = vadd.f32 %v787, %v856
      %v858 = vpop.f32.mrb[0].mxu0
      %859 = vdwg.mxu0
      %v860 = vld [vmem:[%s6] sm:$0x1]
      %v862 = vlaneseq
      %v863 = vshrl.u32 %v862, 7
      %v864 = vsub.s32 0, %v863
      %v865 = vrot.slane %v860, %v864
      %v867 = vadd.f32 %v857, %v865
      %v868 = vmax.f32 %v867, 0.0
      %869 = vst [vmem:[#allocation3] sm:$0x1] 0.0
      %870 = vst [vmem:[#allocation3 + $0x9] sm:$0x1] 0.0
      %871 = vst [vmem:[#allocation3 + $0x1] sm:$0xff] %v868
      %v872 = vld [vmem:[%s7] sm:$0xff]
      %v873 = vld [vmem:[%s7 + $0x8] sm:$0xff]
      %v874 = vld [vmem:[%s7 + $0x10] sm:$0xff]
      %v875 = vld [vmem:[%s7 + $0x18] sm:$0xff]
      %v876 = vld [vmem:[%s7 + $0x20] sm:$0xff]
      %v877 = vld [vmem:[%s7 + $0x28] sm:$0xff]
      %v878 = vld [vmem:[%s7 + $0x30] sm:$0xff]
      %v879 = vld [vmem:[%s7 + $0x38] sm:$0xff]
      %v880 = vld [vmem:[%s7 + $0x40] sm:$0xff]
      %v881 = vld [vmem:[%s7 + $0x48] sm:$0xff]
      %v882 = vld [vmem:[%s7 + $0x50] sm:$0xff]
      %v883 = vld [vmem:[%s7 + $0x58] sm:$0xff]
      %v884 = vld [vmem:[%s7 + $0x60] sm:$0xff]
      %v885 = vld [vmem:[%s7 + $0x68] sm:$0xff]
      %v886 = vld [vmem:[%s7 + $0x70] sm:$0xff]
      %v887 = vld [vmem:[%s7 + $0x78] sm:$0xff]
      %s888 = scalar_lea.vmem %s7, 128
      %v889 = vld [vmem:[%s888] sm:$0xff]
      %v890 = vld [vmem:[%s888 + $0x8] sm:$0xff]
      %v891 = vld [vmem:[%s888 + $0x10] sm:$0xff]
      %v892 = vld [vmem:[%s888 + $0x18] sm:$0xff]
      %v893 = vld [vmem:[%s888 + $0x20] sm:$0xff]
      %v894 = vld [vmem:[%s888 + $0x28] sm:$0xff]
      %v895 = vld [vmem:[%s888 + $0x30] sm:$0xff]
      %v896 = vld [vmem:[%s888 + $0x38] sm:$0xff]
      %v897 = vld [vmem:[%s888 + $0x40] sm:$0xff]
      %v898 = vld [vmem:[%s888 + $0x48] sm:$0xff]
      %v899 = vld [vmem:[%s888 + $0x50] sm:$0xff]
      %v900 = vld [vmem:[%s888 + $0x58] sm:$0xff]
      %v901 = vld [vmem:[%s888 + $0x60] sm:$0xff]
      %v902 = vld [vmem:[%s888 + $0x68] sm:$0xff]
      %v903 = vld [vmem:[%s888 + $0x70] sm:$0xff]
      %v904 = vld [vmem:[%s888 + $0x78] sm:$0xff]
      %s905 = scalar_lea.vmem %s7, 256
      %v906 = vld [vmem:[%s905] sm:$0xff]
      %v907 = vld [vmem:[%s905 + $0x8] sm:$0xff]
      %v908 = vld [vmem:[%s905 + $0x10] sm:$0xff]
      %v909 = vld [vmem:[%s905 + $0x18] sm:$0xff]
      %v910 = vld [vmem:[%s905 + $0x20] sm:$0xff]
      %v911 = vld [vmem:[%s905 + $0x28] sm:$0xff]
      %v912 = vld [vmem:[%s905 + $0x30] sm:$0xff]
      %v913 = vld [vmem:[%s905 + $0x38] sm:$0xff]
      %v914 = vld [vmem:[%s905 + $0x40] sm:$0xff]
      %v915 = vld [vmem:[%s905 + $0x48] sm:$0xff]
      %v916 = vld [vmem:[%s905 + $0x50] sm:$0xff]
      %v917 = vld [vmem:[%s905 + $0x58] sm:$0xff]
      %v918 = vld [vmem:[%s905 + $0x60] sm:$0xff]
      %v919 = vld [vmem:[%s905 + $0x68] sm:$0xff]
      %v920 = vld [vmem:[%s905 + $0x70] sm:$0xff]
      %v921 = vld [vmem:[%s905 + $0x78] sm:$0xff]
      %v922 = vld [vmem:[%s8] sm:$0x1]
      %v923 = vld [vmem:[#allocation3] sm:$0xff]
      %v924 = vld [vmem:[#allocation3 + $0x1] sm:$0xff]
      %925 = vmatprep.subr.mxu0 0.0
      %926 = vmatpush1.msra.mxu0 %v889
      %927 = vmatprep.subr.mxu0 0.0
      %928 = vmatpush1.msra.mxu0 %v890
      %929 = vmatprep.subr.mxu0 0.0
      %930 = vmatpush1.msra.mxu0 %v891
      %931 = vmatprep.subr.mxu0 0.0
      %932 = vmatpush1.msra.mxu0 %v892
      %933 = vmatprep.subr.mxu0 0.0
      %934 = vmatpush1.msra.mxu0 %v893
      %935 = vmatprep.subr.mxu0 0.0
      %936 = vmatpush1.msra.mxu0 %v894
      %937 = vmatprep.subr.mxu0 0.0
      %938 = vmatpush1.msra.mxu0 %v895
      %939 = vmatprep.subr.mxu0 0.0
      %940 = vmatpush1.msra.mxu0 %v896
      %941 = vmatprep.subr.mxu0 0.0
      %942 = vmatpush1.msra.mxu0 %v897
      %943 = vmatprep.subr.mxu0 0.0
      %944 = vmatpush1.msra.mxu0 %v898
      %945 = vmatprep.subr.mxu0 0.0
      %946 = vmatpush1.msra.mxu0 %v899
      %947 = vmatprep.subr.mxu0 0.0
      %948 = vmatpush1.msra.mxu0 %v900
      %949 = vmatprep.subr.mxu0 0.0
      %950 = vmatpush1.msra.mxu0 %v901
      %951 = vmatprep.subr.mxu0 0.0
      %952 = vmatpush1.msra.mxu0 %v902
      %953 = vmatprep.subr.mxu0 0.0
      %954 = vmatpush1.msra.mxu0 %v903
      %955 = vmatprep.subr.mxu0 0.0
      %956 = vmatpush1.msra.mxu0 %v904
      %957 = vmatprep.subr.mxu0 0.0
      %958 = vmatpush1.msra.mxu0 0.0
      %959 = vmatprep.subr.mxu0 0.0
      %960 = vmatpush1.msra.mxu0 0.0
      %961 = vmatprep.subr.mxu0 0.0
      %962 = vmatpush1.msra.mxu0 0.0
      %963 = vmatprep.subr.mxu0 0.0
      %964 = vmatpush1.msra.mxu0 0.0
      %965 = vmatprep.subr.mxu0 0.0
      %966 = vmatpush1.msra.mxu0 0.0
      %967 = vmatprep.subr.mxu0 0.0
      %968 = vmatpush1.msra.mxu0 0.0
      %969 = vmatprep.subr.mxu0 0.0
      %970 = vmatpush1.msra.mxu0 0.0
      %971 = vmatprep.subr.mxu0 0.0
      %972 = vmatpush1.msra.mxu0 0.0
      %973 = vmatprep.subr.mxu0 0.0
      %974 = vmatpush1.msra.mxu0 0.0
      %975 = vmatprep.subr.mxu0 0.0
      %976 = vmatpush1.msra.mxu0 0.0
      %977 = vmatprep.subr.mxu0 0.0
      %978 = vmatpush1.msra.mxu0 0.0
      %979 = vmatprep.subr.mxu0 0.0
      %980 = vmatpush1.msra.mxu0 0.0
      %981 = vmatprep.subr.mxu0 0.0
      %982 = vmatpush1.msra.mxu0 0.0
      %983 = vmatprep.subr.mxu0 0.0
      %984 = vmatpush1.msra.mxu0 0.0
      %985 = vmatprep.subr.mxu0 0.0
      %986 = vmatpush1.msra.mxu0 0.0
      %987 = vmatprep.subr.mxu0 0.0
      %988 = vmatpush1.msra.mxu0 0.0
      %989 = vmatprep.mubr.f32.mxu0 0.0
      %990 = vmatmul.mubr.f32.gmra.mrb[0].mxu0 %v924
      %v991 = vpop.f32.mrb[0].mxu0
      %v992 = vadd.f32 0.0, %v991
      %v993 = vpop.f32.mrb[0].mxu0
      %994 = vdwg.mxu0
      %995 = vmatprep.subr.mxu0 0.0
      %996 = vmatpush1.msra.mxu0 %v872
      %997 = vmatprep.subr.mxu0 0.0
      %998 = vmatpush1.msra.mxu0 %v873
      %999 = vmatprep.subr.mxu0 0.0
      %1000 = vmatpush1.msra.mxu0 %v874
      %1001 = vmatprep.subr.mxu0 0.0
      %1002 = vmatpush1.msra.mxu0 %v875
      %1003 = vmatprep.subr.mxu0 0.0
      %1004 = vmatpush1.msra.mxu0 %v876
      %1005 = vmatprep.subr.mxu0 0.0
      %1006 = vmatpush1.msra.mxu0 %v877
      %1007 = vmatprep.subr.mxu0 0.0
      %1008 = vmatpush1.msra.mxu0 %v878
      %1009 = vmatprep.subr.mxu0 0.0
      %1010 = vmatpush1.msra.mxu0 %v879
      %1011 = vmatprep.subr.mxu0 0.0
      %1012 = vmatpush1.msra.mxu0 %v880
      %1013 = vmatprep.subr.mxu0 0.0
      %1014 = vmatpush1.msra.mxu0 %v881
      %1015 = vmatprep.subr.mxu0 0.0
      %1016 = vmatpush1.msra.mxu0 %v882
      %1017 = vmatprep.subr.mxu0 0.0
      %1018 = vmatpush1.msra.mxu0 %v883
      %1019 = vmatprep.subr.mxu0 0.0
      %1020 = vmatpush1.msra.mxu0 %v884
      %1021 = vmatprep.subr.mxu0 0.0
      %1022 = vmatpush1.msra.mxu0 %v885
      %1023 = vmatprep.subr.mxu0 0.0
      %1024 = vmatpush1.msra.mxu0 %v886
      %1025 = vmatprep.subr.mxu0 0.0
      %1026 = vmatpush1.msra.mxu0 %v887
      %1027 = vmatprep.subr.mxu0 0.0
      %1028 = vmatpush1.msra.mxu0 0.0
      %1029 = vmatprep.subr.mxu0 0.0
      %1030 = vmatpush1.msra.mxu0 0.0
      %1031 = vmatprep.subr.mxu0 0.0
      %1032 = vmatpush1.msra.mxu0 0.0
      %1033 = vmatprep.subr.mxu0 0.0
      %1034 = vmatpush1.msra.mxu0 0.0
      %1035 = vmatprep.subr.mxu0 0.0
      %1036 = vmatpush1.msra.mxu0 0.0
      %1037 = vmatprep.subr.mxu0 0.0
      %1038 = vmatpush1.msra.mxu0 0.0
      %1039 = vmatprep.subr.mxu0 0.0
      %1040 = vmatpush1.msra.mxu0 0.0
      %1041 = vmatprep.subr.mxu0 0.0
      %1042 = vmatpush1.msra.mxu0 0.0
      %1043 = vmatprep.subr.mxu0 0.0
      %1044 = vmatpush1.msra.mxu0 0.0
      %1045 = vmatprep.subr.mxu0 0.0
      %1046 = vmatpush1.msra.mxu0 0.0
      %1047 = vmatprep.subr.mxu0 0.0
      %1048 = vmatpush1.msra.mxu0 0.0
      %1049 = vmatprep.subr.mxu0 0.0
      %1050 = vmatpush1.msra.mxu0 0.0
      %1051 = vmatprep.subr.mxu0 0.0
      %1052 = vmatpush1.msra.mxu0 0.0
      %1053 = vmatprep.subr.mxu0 0.0
      %1054 = vmatpush1.msra.mxu0 0.0
      %1055 = vmatprep.subr.mxu0 0.0
      %1056 = vmatpush1.msra.mxu0 0.0
      %1057 = vmatprep.subr.mxu0 0.0
      %1058 = vmatpush1.msra.mxu0 0.0
      %1059 = vmatprep.mubr.f32.mxu0 0.0
      %1060 = vmatmul.mubr.f32.gmra.mrb[0].mxu0 %v923
      %v1061 = vpop.f32.mrb[0].mxu0
      %v1062 = vadd.f32 %v992, %v1061
      %v1063 = vpop.f32.mrb[0].mxu0
      %1064 = vdwg.mxu0
      %v1065 = vld [vmem:[#allocation3 + $0x2] sm:$0xff]
      %1066 = vmatprep.subr.mxu0 0.0
      %1067 = vmatpush1.msra.mxu0 %v906
      %1068 = vmatprep.subr.mxu0 0.0
      %1069 = vmatpush1.msra.mxu0 %v907
      %1070 = vmatprep.subr.mxu0 0.0
      %1071 = vmatpush1.msra.mxu0 %v908
      %1072 = vmatprep.subr.mxu0 0.0
      %1073 = vmatpush1.msra.mxu0 %v909
      %1074 = vmatprep.subr.mxu0 0.0
      %1075 = vmatpush1.msra.mxu0 %v910
      %1076 = vmatprep.subr.mxu0 0.0
      %1077 = vmatpush1.msra.mxu0 %v911
      %1078 = vmatprep.subr.mxu0 0.0
      %1079 = vmatpush1.msra.mxu0 %v912
      %1080 = vmatprep.subr.mxu0 0.0
      %1081 = vmatpush1.msra.mxu0 %v913
      %1082 = vmatprep.subr.mxu0 0.0
      %1083 = vmatpush1.msra.mxu0 %v914
      %1084 = vmatprep.subr.mxu0 0.0
      %1085 = vmatpush1.msra.mxu0 %v915
      %1086 = vmatprep.subr.mxu0 0.0
      %1087 = vmatpush1.msra.mxu0 %v916
      %1088 = vmatprep.subr.mxu0 0.0
      %1089 = vmatpush1.msra.mxu0 %v917
      %1090 = vmatprep.subr.mxu0 0.0
      %1091 = vmatpush1.msra.mxu0 %v918
      %1092 = vmatprep.subr.mxu0 0.0
      %1093 = vmatpush1.msra.mxu0 %v919
      %1094 = vmatprep.subr.mxu0 0.0
      %1095 = vmatpush1.msra.mxu0 %v920
      %1096 = vmatprep.subr.mxu0 0.0
      %1097 = vmatpush1.msra.mxu0 %v921
      %1098 = vmatprep.subr.mxu0 0.0
      %1099 = vmatpush1.msra.mxu0 0.0
      %1100 = vmatprep.subr.mxu0 0.0
      %1101 = vmatpush1.msra.mxu0 0.0
      %1102 = vmatprep.subr.mxu0 0.0
      %1103 = vmatpush1.msra.mxu0 0.0
      %1104 = vmatprep.subr.mxu0 0.0
      %1105 = vmatpush1.msra.mxu0 0.0
      %1106 = vmatprep.subr.mxu0 0.0
      %1107 = vmatpush1.msra.mxu0 0.0
      %1108 = vmatprep.subr.mxu0 0.0
      %1109 = vmatpush1.msra.mxu0 0.0
      %1110 = vmatprep.subr.mxu0 0.0
      %1111 = vmatpush1.msra.mxu0 0.0
      %1112 = vmatprep.subr.mxu0 0.0
      %1113 = vmatpush1.msra.mxu0 0.0
      %1114 = vmatprep.subr.mxu0 0.0
      %1115 = vmatpush1.msra.mxu0 0.0
      %1116 = vmatprep.subr.mxu0 0.0
      %1117 = vmatpush1.msra.mxu0 0.0
      %1118 = vmatprep.subr.mxu0 0.0
      %1119 = vmatpush1.msra.mxu0 0.0
      %1120 = vmatprep.subr.mxu0 0.0
      %1121 = vmatpush1.msra.mxu0 0.0
      %1122 = vmatprep.subr.mxu0 0.0
      %1123 = vmatpush1.msra.mxu0 0.0
      %1124 = vmatprep.subr.mxu0 0.0
      %1125 = vmatpush1.msra.mxu0 0.0
      %1126 = vmatprep.subr.mxu0 0.0
      %1127 = vmatpush1.msra.mxu0 0.0
      %1128 = vmatprep.subr.mxu0 0.0
      %1129 = vmatpush1.msra.mxu0 0.0
      %1130 = vmatprep.mubr.f32.mxu0 0.0
      %1131 = vmatmul.mubr.f32.gmra.mrb[0].mxu0 %v1065
      %v1132 = vpop.f32.mrb[0].mxu0
      %v1133 = vadd.f32 0.0, %v1132
      %v1134 = vpop.f32.mrb[0].mxu0
      %1135 = vdwg.mxu0
      %v1136 = vadd.f32 %v1062, %v1133
      %v1138 = vlaneseq
      %v1139 = vshrl.u32 %v1138, 7
      %v1140 = vsub.s32 0, %v1139
      %v1141 = vrot.slane %v922, %v1140
      %v1143 = vadd.f32 %v1136, %v1141
      %v1144 = vmax.f32 %v1143, 0.0
      %1145 = vst [vmem:[#allocation3 + $0x1] sm:$0xff] %v1144
      %v1146 = vld [vmem:[%s9] sm:$0xff]
      %v1147 = vld [vmem:[%s9 + $0x8] sm:$0xff]
      %v1148 = vld [vmem:[%s9 + $0x10] sm:$0xff]
      %v1149 = vld [vmem:[%s9 + $0x18] sm:$0xff]
      %v1150 = vld [vmem:[%s9 + $0x20] sm:$0xff]
      %v1151 = vld [vmem:[%s9 + $0x28] sm:$0xff]
      %v1152 = vld [vmem:[%s9 + $0x30] sm:$0xff]
      %v1153 = vld [vmem:[%s9 + $0x38] sm:$0xff]
      %v1154 = vld [vmem:[%s9 + $0x40] sm:$0xff]
      %v1155 = vld [vmem:[%s9 + $0x48] sm:$0xff]
      %v1156 = vld [vmem:[%s9 + $0x50] sm:$0xff]
      %v1157 = vld [vmem:[%s9 + $0x58] sm:$0xff]
      %v1158 = vld [vmem:[%s9 + $0x60] sm:$0xff]
      %v1159 = vld [vmem:[%s9 + $0x68] sm:$0xff]
      %v1160 = vld [vmem:[%s9 + $0x70] sm:$0xff]
      %v1161 = vld [vmem:[%s9 + $0x78] sm:$0xff]
      %s1162 = scalar_lea.vmem %s9, 128
      %v1163 = vld [vmem:[%s1162] sm:$0xff]
      %v1164 = vld [vmem:[%s1162 + $0x8] sm:$0xff]
      %v1165 = vld [vmem:[%s1162 + $0x10] sm:$0xff]
      %v1166 = vld [vmem:[%s1162 + $0x18] sm:$0xff]
      %v1167 = vld [vmem:[%s1162 + $0x20] sm:$0xff]
      %v1168 = vld [vmem:[%s1162 + $0x28] sm:$0xff]
      %v1169 = vld [vmem:[%s1162 + $0x30] sm:$0xff]
      %v1170 = vld [vmem:[%s1162 + $0x38] sm:$0xff]
      %v1171 = vld [vmem:[%s1162 + $0x40] sm:$0xff]
      %v1172 = vld [vmem:[%s1162 + $0x48] sm:$0xff]
      %v1173 = vld [vmem:[%s1162 + $0x50] sm:$0xff]
      %v1174 = vld [vmem:[%s1162 + $0x58] sm:$0xff]
      %v1175 = vld [vmem:[%s1162 + $0x60] sm:$0xff]
      %v1176 = vld [vmem:[%s1162 + $0x68] sm:$0xff]
      %v1177 = vld [vmem:[%s1162 + $0x70] sm:$0xff]
      %v1178 = vld [vmem:[%s1162 + $0x78] sm:$0xff]
      %s1179 = scalar_lea.vmem %s9, 256
      %v1180 = vld [vmem:[%s1179] sm:$0xff]
      %v1181 = vld [vmem:[%s1179 + $0x8] sm:$0xff]
      %v1182 = vld [vmem:[%s1179 + $0x10] sm:$0xff]
      %v1183 = vld [vmem:[%s1179 + $0x18] sm:$0xff]
      %v1184 = vld [vmem:[%s1179 + $0x20] sm:$0xff]
      %v1185 = vld [vmem:[%s1179 + $0x28] sm:$0xff]
      %v1186 = vld [vmem:[%s1179 + $0x30] sm:$0xff]
      %v1187 = vld [vmem:[%s1179 + $0x38] sm:$0xff]
      %v1188 = vld [vmem:[%s1179 + $0x40] sm:$0xff]
      %v1189 = vld [vmem:[%s1179 + $0x48] sm:$0xff]
      %v1190 = vld [vmem:[%s1179 + $0x50] sm:$0xff]
      %v1191 = vld [vmem:[%s1179 + $0x58] sm:$0xff]
      %v1192 = vld [vmem:[%s1179 + $0x60] sm:$0xff]
      %v1193 = vld [vmem:[%s1179 + $0x68] sm:$0xff]
      %v1194 = vld [vmem:[%s1179 + $0x70] sm:$0xff]
      %v1195 = vld [vmem:[%s1179 + $0x78] sm:$0xff]
      %v1196 = vld [vmem:[%s10] sm:$0x1]
      %v1197 = vld [vmem:[#allocation3] sm:$0xff]
      %v1198 = vld [vmem:[#allocation3 + $0x1] sm:$0xff]
      %1199 = vmatprep.subr.mxu0 0.0
      %1200 = vmatpush1.msra.mxu0 %v1163
      %1201 = vmatprep.subr.mxu0 0.0
      %1202 = vmatpush1.msra.mxu0 %v1164
      %1203 = vmatprep.subr.mxu0 0.0
      %1204 = vmatpush1.msra.mxu0 %v1165
      %1205 = vmatprep.subr.mxu0 0.0
      %1206 = vmatpush1.msra.mxu0 %v1166
      %1207 = vmatprep.subr.mxu0 0.0
      %1208 = vmatpush1.msra.mxu0 %v1167
      %1209 = vmatprep.subr.mxu0 0.0
      %1210 = vmatpush1.msra.mxu0 %v1168
      %1211 = vmatprep.subr.mxu0 0.0
      %1212 = vmatpush1.msra.mxu0 %v1169
      %1213 = vmatprep.subr.mxu0 0.0
      %1214 = vmatpush1.msra.mxu0 %v1170
      %1215 = vmatprep.subr.mxu0 0.0
      %1216 = vmatpush1.msra.mxu0 %v1171
      %1217 = vmatprep.subr.mxu0 0.0
      %1218 = vmatpush1.msra.mxu0 %v1172
      %1219 = vmatprep.subr.mxu0 0.0
      %1220 = vmatpush1.msra.mxu0 %v1173
      %1221 = vmatprep.subr.mxu0 0.0
      %1222 = vmatpush1.msra.mxu0 %v1174
      %1223 = vmatprep.subr.mxu0 0.0
      %1224 = vmatpush1.msra.mxu0 %v1175
      %1225 = vmatprep.subr.mxu0 0.0
      %1226 = vmatpush1.msra.mxu0 %v1176
      %1227 = vmatprep.subr.mxu0 0.0
      %1228 = vmatpush1.msra.mxu0 %v1177
      %1229 = vmatprep.subr.mxu0 0.0
      %1230 = vmatpush1.msra.mxu0 %v1178
      %1231 = vmatprep.subr.mxu0 0.0
      %1232 = vmatpush1.msra.mxu0 0.0
      %1233 = vmatprep.subr.mxu0 0.0
      %1234 = vmatpush1.msra.mxu0 0.0
      %1235 = vmatprep.subr.mxu0 0.0
      %1236 = vmatpush1.msra.mxu0 0.0
      %1237 = vmatprep.subr.mxu0 0.0
      %1238 = vmatpush1.msra.mxu0 0.0
      %1239 = vmatprep.subr.mxu0 0.0
      %1240 = vmatpush1.msra.mxu0 0.0
      %1241 = vmatprep.subr.mxu0 0.0
      %1242 = vmatpush1.msra.mxu0 0.0
      %1243 = vmatprep.subr.mxu0 0.0
      %1244 = vmatpush1.msra.mxu0 0.0
      %1245 = vmatprep.subr.mxu0 0.0
      %1246 = vmatpush1.msra.mxu0 0.0
      %1247 = vmatprep.subr.mxu0 0.0
      %1248 = vmatpush1.msra.mxu0 0.0
      %1249 = vmatprep.subr.mxu0 0.0
      %1250 = vmatpush1.msra.mxu0 0.0
      %1251 = vmatprep.subr.mxu0 0.0
      %1252 = vmatpush1.msra.mxu0 0.0
      %1253 = vmatprep.subr.mxu0 0.0
      %1254 = vmatpush1.msra.mxu0 0.0
      %1255 = vmatprep.subr.mxu0 0.0
      %1256 = vmatpush1.msra.mxu0 0.0
      %1257 = vmatprep.subr.mxu0 0.0
      %1258 = vmatpush1.msra.mxu0 0.0
      %1259 = vmatprep.subr.mxu0 0.0
      %1260 = vmatpush1.msra.mxu0 0.0
      %1261 = vmatprep.subr.mxu0 0.0
      %1262 = vmatpush1.msra.mxu0 0.0
      %1263 = vmatprep.mubr.f32.mxu0 0.0
      %1264 = vmatmul.mubr.f32.gmra.mrb[0].mxu0 %v1198
      %v1265 = vpop.f32.mrb[0].mxu0
      %v1266 = vadd.f32 0.0, %v1265
      %v1267 = vpop.f32.mrb[0].mxu0
      %1268 = vdwg.mxu0
      %1269 = vmatprep.subr.mxu0 0.0
      %1270 = vmatpush1.msra.mxu0 %v1146
      %1271 = vmatprep.subr.mxu0 0.0
      %1272 = vmatpush1.msra.mxu0 %v1147
      %1273 = vmatprep.subr.mxu0 0.0
      %1274 = vmatpush1.msra.mxu0 %v1148
      %1275 = vmatprep.subr.mxu0 0.0
      %1276 = vmatpush1.msra.mxu0 %v1149
      %1277 = vmatprep.subr.mxu0 0.0
      %1278 = vmatpush1.msra.mxu0 %v1150
      %1279 = vmatprep.subr.mxu0 0.0
      %1280 = vmatpush1.msra.mxu0 %v1151
      %1281 = vmatprep.subr.mxu0 0.0
      %1282 = vmatpush1.msra.mxu0 %v1152
      %1283 = vmatprep.subr.mxu0 0.0
      %1284 = vmatpush1.msra.mxu0 %v1153
      %1285 = vmatprep.subr.mxu0 0.0
      %1286 = vmatpush1.msra.mxu0 %v1154
      %1287 = vmatprep.subr.mxu0 0.0
      %1288 = vmatpush1.msra.mxu0 %v1155
      %1289 = vmatprep.subr.mxu0 0.0
      %1290 = vmatpush1.msra.mxu0 %v1156
      %1291 = vmatprep.subr.mxu0 0.0
      %1292 = vmatpush1.msra.mxu0 %v1157
      %1293 = vmatprep.subr.mxu0 0.0
      %1294 = vmatpush1.msra.mxu0 %v1158
      %1295 = vmatprep.subr.mxu0 0.0
      %1296 = vmatpush1.msra.mxu0 %v1159
      %1297 = vmatprep.subr.mxu0 0.0
      %1298 = vmatpush1.msra.mxu0 %v1160
      %1299 = vmatprep.subr.mxu0 0.0
      %1300 = vmatpush1.msra.mxu0 %v1161
      %1301 = vmatprep.subr.mxu0 0.0
      %1302 = vmatpush1.msra.mxu0 0.0
      %1303 = vmatprep.subr.mxu0 0.0
      %1304 = vmatpush1.msra.mxu0 0.0
      %1305 = vmatprep.subr.mxu0 0.0
      %1306 = vmatpush1.msra.mxu0 0.0
      %1307 = vmatprep.subr.mxu0 0.0
      %1308 = vmatpush1.msra.mxu0 0.0
      %1309 = vmatprep.subr.mxu0 0.0
      %1310 = vmatpush1.msra.mxu0 0.0
      %1311 = vmatprep.subr.mxu0 0.0
      %1312 = vmatpush1.msra.mxu0 0.0
      %1313 = vmatprep.subr.mxu0 0.0
      %1314 = vmatpush1.msra.mxu0 0.0
      %1315 = vmatprep.subr.mxu0 0.0
      %1316 = vmatpush1.msra.mxu0 0.0
      %1317 = vmatprep.subr.mxu0 0.0
      %1318 = vmatpush1.msra.mxu0 0.0
      %1319 = vmatprep.subr.mxu0 0.0
      %1320 = vmatpush1.msra.mxu0 0.0
      %1321 = vmatprep.subr.mxu0 0.0
      %1322 = vmatpush1.msra.mxu0 0.0
      %1323 = vmatprep.subr.mxu0 0.0
      %1324 = vmatpush1.msra.mxu0 0.0
      %1325 = vmatprep.subr.mxu0 0.0
      %1326 = vmatpush1.msra.mxu0 0.0
      %1327 = vmatprep.subr.mxu0 0.0
      %1328 = vmatpush1.msra.mxu0 0.0
      %1329 = vmatprep.subr.mxu0 0.0
      %1330 = vmatpush1.msra.mxu0 0.0
      %1331 = vmatprep.subr.mxu0 0.0
      %1332 = vmatpush1.msra.mxu0 0.0
      %1333 = vmatprep.mubr.f32.mxu0 0.0
      %1334 = vmatmul.mubr.f32.gmra.mrb[0].mxu0 %v1197
      %v1335 = vpop.f32.mrb[0].mxu0
      %v1336 = vadd.f32 %v1266, %v1335
      %v1337 = vpop.f32.mrb[0].mxu0
      %1338 = vdwg.mxu0
      %v1339 = vld [vmem:[#allocation3 + $0x2] sm:$0xff]
      %1340 = vmatprep.subr.mxu0 0.0
      %1341 = vmatpush1.msra.mxu0 %v1180
      %1342 = vmatprep.subr.mxu0 0.0
      %1343 = vmatpush1.msra.mxu0 %v1181
      %1344 = vmatprep.subr.mxu0 0.0
      %1345 = vmatpush1.msra.mxu0 %v1182
      %1346 = vmatprep.subr.mxu0 0.0
      %1347 = vmatpush1.msra.mxu0 %v1183
      %1348 = vmatprep.subr.mxu0 0.0
      %1349 = vmatpush1.msra.mxu0 %v1184
      %1350 = vmatprep.subr.mxu0 0.0
      %1351 = vmatpush1.msra.mxu0 %v1185
      %1352 = vmatprep.subr.mxu0 0.0
      %1353 = vmatpush1.msra.mxu0 %v1186
      %1354 = vmatprep.subr.mxu0 0.0
      %1355 = vmatpush1.msra.mxu0 %v1187
      %1356 = vmatprep.subr.mxu0 0.0
      %1357 = vmatpush1.msra.mxu0 %v1188
      %1358 = vmatprep.subr.mxu0 0.0
      %1359 = vmatpush1.msra.mxu0 %v1189
      %1360 = vmatprep.subr.mxu0 0.0
      %1361 = vmatpush1.msra.mxu0 %v1190
      %1362 = vmatprep.subr.mxu0 0.0
      %1363 = vmatpush1.msra.mxu0 %v1191
      %1364 = vmatprep.subr.mxu0 0.0
      %1365 = vmatpush1.msra.mxu0 %v1192
      %1366 = vmatprep.subr.mxu0 0.0
      %1367 = vmatpush1.msra.mxu0 %v1193
      %1368 = vmatprep.subr.mxu0 0.0
      %1369 = vmatpush1.msra.mxu0 %v1194
      %1370 = vmatprep.subr.mxu0 0.0
      %1371 = vmatpush1.msra.mxu0 %v1195
      %1372 = vmatprep.subr.mxu0 0.0
      %1373 = vmatpush1.msra.mxu0 0.0
      %1374 = vmatprep.subr.mxu0 0.0
      %1375 = vmatpush1.msra.mxu0 0.0
      %1376 = vmatprep.subr.mxu0 0.0
      %1377 = vmatpush1.msra.mxu0 0.0
      %1378 = vmatprep.subr.mxu0 0.0
      %1379 = vmatpush1.msra.mxu0 0.0
      %1380 = vmatprep.subr.mxu0 0.0
      %1381 = vmatpush1.msra.mxu0 0.0
      %1382 = vmatprep.subr.mxu0 0.0
      %1383 = vmatpush1.msra.mxu0 0.0
      %1384 = vmatprep.subr.mxu0 0.0
      %1385 = vmatpush1.msra.mxu0 0.0
      %1386 = vmatprep.subr.mxu0 0.0
      %1387 = vmatpush1.msra.mxu0 0.0
      %1388 = vmatprep.subr.mxu0 0.0
      %1389 = vmatpush1.msra.mxu0 0.0
      %1390 = vmatprep.subr.mxu0 0.0
      %1391 = vmatpush1.msra.mxu0 0.0
      %1392 = vmatprep.subr.mxu0 0.0
      %1393 = vmatpush1.msra.mxu0 0.0
      %1394 = vmatprep.subr.mxu0 0.0
      %1395 = vmatpush1.msra.mxu0 0.0
      %1396 = vmatprep.subr.mxu0 0.0
      %1397 = vmatpush1.msra.mxu0 0.0
      %1398 = vmatprep.subr.mxu0 0.0
      %1399 = vmatpush1.msra.mxu0 0.0
      %1400 = vmatprep.subr.mxu0 0.0
      %1401 = vmatpush1.msra.mxu0 0.0
      %1402 = vmatprep.subr.mxu0 0.0
      %1403 = vmatpush1.msra.mxu0 0.0
      %1404 = vmatprep.mubr.f32.mxu0 0.0
      %1405 = vmatmul.mubr.f32.gmra.mrb[0].mxu0 %v1339
      %v1406 = vpop.f32.mrb[0].mxu0
      %v1407 = vadd.f32 0.0, %v1406
      %v1408 = vpop.f32.mrb[0].mxu0
      %1409 = vdwg.mxu0
      %v1410 = vadd.f32 %v1336, %v1407
      %v1412 = vlaneseq
      %v1413 = vshrl.u32 %v1412, 7
      %v1414 = vsub.s32 0, %v1413
      %v1415 = vrot.slane %v1196, %v1414
      %v1417 = vadd.f32 %v1410, %v1415
      %v1418 = vmax.f32 %v1417, 0.0
      %v1419 = vld [vmem:[%s11] sm:$0xff]
      %v1420 = vld [vmem:[%s11 + $0x8] sm:$0xff]
      %v1421 = vld [vmem:[%s11 + $0x10] sm:$0xff]
      %v1422 = vld [vmem:[%s11 + $0x18] sm:$0xff]
      %v1423 = vld [vmem:[%s11 + $0x20] sm:$0xff]
      %v1424 = vld [vmem:[%s11 + $0x28] sm:$0xff]
      %v1425 = vld [vmem:[%s11 + $0x30] sm:$0xff]
      %v1426 = vld [vmem:[%s11 + $0x38] sm:$0xff]
      %v1427 = vld [vmem:[%s11 + $0x40] sm:$0xff]
      %v1428 = vld [vmem:[%s11 + $0x48] sm:$0xff]
      %v1429 = vld [vmem:[%s11 + $0x50] sm:$0xff]
      %v1430 = vld [vmem:[%s11 + $0x58] sm:$0xff]
      %v1431 = vld [vmem:[%s11 + $0x60] sm:$0xff]
      %v1432 = vld [vmem:[%s11 + $0x68] sm:$0xff]
      %v1433 = vld [vmem:[%s11 + $0x70] sm:$0xff]
      %v1434 = vld [vmem:[%s11 + $0x78] sm:$0xff]
      %v1435 = vld [vmem:[%s12] sm:$0x1]
      %v1437 = vlaneseq
      %v1438 = vshrl.u32 %v1437, 7
      %v1439 = vsub.s32 0, %v1438
      %v1440 = vrot.slane %v1435, %v1439
      %1442 = vmatprep.subr.mxu0 0.0
      %1443 = vmatpush1.msra.mxu0 %v1419
      %1444 = vmatprep.subr.mxu0 0.0
      %1445 = vmatpush1.msra.mxu0 %v1420
      %1446 = vmatprep.subr.mxu0 0.0
      %1447 = vmatpush1.msra.mxu0 %v1421
      %1448 = vmatprep.subr.mxu0 0.0
      %1449 = vmatpush1.msra.mxu0 %v1422
      %1450 = vmatprep.subr.mxu0 0.0
      %1451 = vmatpush1.msra.mxu0 %v1423
      %1452 = vmatprep.subr.mxu0 0.0
      %1453 = vmatpush1.msra.mxu0 %v1424
      %1454 = vmatprep.subr.mxu0 0.0
      %1455 = vmatpush1.msra.mxu0 %v1425
      %1456 = vmatprep.subr.mxu0 0.0
      %1457 = vmatpush1.msra.mxu0 %v1426
      %1458 = vmatprep.subr.mxu0 0.0
      %1459 = vmatpush1.msra.mxu0 %v1427
      %1460 = vmatprep.subr.mxu0 0.0
      %1461 = vmatpush1.msra.mxu0 %v1428
      %1462 = vmatprep.subr.mxu0 0.0
      %1463 = vmatpush1.msra.mxu0 %v1429
      %1464 = vmatprep.subr.mxu0 0.0
      %1465 = vmatpush1.msra.mxu0 %v1430
      %1466 = vmatprep.subr.mxu0 0.0
      %1467 = vmatpush1.msra.mxu0 %v1431
      %1468 = vmatprep.subr.mxu0 0.0
      %1469 = vmatpush1.msra.mxu0 %v1432
      %1470 = vmatprep.subr.mxu0 0.0
      %1471 = vmatpush1.msra.mxu0 %v1433
      %1472 = vmatprep.subr.mxu0 0.0
      %1473 = vmatpush1.msra.mxu0 %v1434
      %1474 = vmatprep.subr.mxu0 0.0
      %1475 = vmatpush1.msra.mxu0 0.0
      %1476 = vmatprep.subr.mxu0 0.0
      %1477 = vmatpush1.msra.mxu0 0.0
      %1478 = vmatprep.subr.mxu0 0.0
      %1479 = vmatpush1.msra.mxu0 0.0
      %1480 = vmatprep.subr.mxu0 0.0
      %1481 = vmatpush1.msra.mxu0 0.0
      %1482 = vmatprep.subr.mxu0 0.0
      %1483 = vmatpush1.msra.mxu0 0.0
      %1484 = vmatprep.subr.mxu0 0.0
      %1485 = vmatpush1.msra.mxu0 0.0
      %1486 = vmatprep.subr.mxu0 0.0
      %1487 = vmatpush1.msra.mxu0 0.0
      %1488 = vmatprep.subr.mxu0 0.0
      %1489 = vmatpush1.msra.mxu0 0.0
      %1490 = vmatprep.subr.mxu0 0.0
      %1491 = vmatpush1.msra.mxu0 0.0
      %1492 = vmatprep.subr.mxu0 0.0
      %1493 = vmatpush1.msra.mxu0 0.0
      %1494 = vmatprep.subr.mxu0 0.0
      %1495 = vmatpush1.msra.mxu0 0.0
      %1496 = vmatprep.subr.mxu0 0.0
      %1497 = vmatpush1.msra.mxu0 0.0
      %1498 = vmatprep.subr.mxu0 0.0
      %1499 = vmatpush1.msra.mxu0 0.0
      %1500 = vmatprep.subr.mxu0 0.0
      %1501 = vmatpush1.msra.mxu0 0.0
      %1502 = vmatprep.subr.mxu0 0.0
      %1503 = vmatpush1.msra.mxu0 0.0
      %1504 = vmatprep.subr.mxu0 0.0
      %1505 = vmatpush1.msra.mxu0 0.0
      %1506 = vmatprep.mubr.f32.mxu0 0.0
      %1507 = vmatmul.mubr.f32.gmra.mrb[0].mxu0 %v1418
      %v1508 = vpop.f32.mrb[0].mxu0
      %v1509 = vadd.f32 %v1440, %v1508
      %v1510 = vpop.f32.mrb[0].mxu0
      %1511 = vdwg.mxu0
      %v1512 = vadd.f32 %v1143, %v1509
      %v1513 = vmax.f32 %v1512, 0.0
      %1514 = vst [vmem:[#allocation3 + $0x1] sm:$0xff] %v1513
      %s1515 = scalar_lea.vmem %s9, 384
      %v1516 = vld [vmem:[%s1515] sm:$0xff]
      %v1517 = vld [vmem:[%s1515 + $0x8] sm:$0xff]
      %v1518 = vld [vmem:[%s1515 + $0x10] sm:$0xff]
      %v1519 = vld [vmem:[%s1515 + $0x18] sm:$0xff]
      %v1520 = vld [vmem:[%s1515 + $0x20] sm:$0xff]
      %v1521 = vld [vmem:[%s1515 + $0x28] sm:$0xff]
      %v1522 = vld [vmem:[%s1515 + $0x30] sm:$0xff]
      %v1523 = vld [vmem:[%s1515 + $0x38] sm:$0xff]
      %v1524 = vld [vmem:[%s1515 + $0x40] sm:$0xff]
      %v1525 = vld [vmem:[%s1515 + $0x48] sm:$0xff]
      %v1526 = vld [vmem:[%s1515 + $0x50] sm:$0xff]
      %v1527 = vld [vmem:[%s1515 + $0x58] sm:$0xff]
      %v1528 = vld [vmem:[%s1515 + $0x60] sm:$0xff]
      %v1529 = vld [vmem:[%s1515 + $0x68] sm:$0xff]
      %v1530 = vld [vmem:[%s1515 + $0x70] sm:$0xff]
      %v1531 = vld [vmem:[%s1515 + $0x78] sm:$0xff]
      %s1532 = scalar_lea.vmem %s9, 512
      %v1533 = vld [vmem:[%s1532] sm:$0xff]
      %v1534 = vld [vmem:[%s1532 + $0x8] sm:$0xff]
      %v1535 = vld [vmem:[%s1532 + $0x10] sm:$0xff]
      %v1536 = vld [vmem:[%s1532 + $0x18] sm:$0xff]
      %v1537 = vld [vmem:[%s1532 + $0x20] sm:$0xff]
      %v1538 = vld [vmem:[%s1532 + $0x28] sm:$0xff]
      %v1539 = vld [vmem:[%s1532 + $0x30] sm:$0xff]
      %v1540 = vld [vmem:[%s1532 + $0x38] sm:$0xff]
      %v1541 = vld [vmem:[%s1532 + $0x40] sm:$0xff]
      %v1542 = vld [vmem:[%s1532 + $0x48] sm:$0xff]
      %v1543 = vld [vmem:[%s1532 + $0x50] sm:$0xff]
      %v1544 = vld [vmem:[%s1532 + $0x58] sm:$0xff]
      %v1545 = vld [vmem:[%s1532 + $0x60] sm:$0xff]
      %v1546 = vld [vmem:[%s1532 + $0x68] sm:$0xff]
      %v1547 = vld [vmem:[%s1532 + $0x70] sm:$0xff]
      %v1548 = vld [vmem:[%s1532 + $0x78] sm:$0xff]
      %s1549 = scalar_lea.vmem %s9, 640
      %v1550 = vld [vmem:[%s1549] sm:$0xff]
      %v1551 = vld [vmem:[%s1549 + $0x8] sm:$0xff]
      %v1552 = vld [vmem:[%s1549 + $0x10] sm:$0xff]
      %v1553 = vld [vmem:[%s1549 + $0x18] sm:$0xff]
      %v1554 = vld [vmem:[%s1549 + $0x20] sm:$0xff]
      %v1555 = vld [vmem:[%s1549 + $0x28] sm:$0xff]
      %v1556 = vld [vmem:[%s1549 + $0x30] sm:$0xff]
      %v1557 = vld [vmem:[%s1549 + $0x38] sm:$0xff]
      %v1558 = vld [vmem:[%s1549 + $0x40] sm:$0xff]
      %v1559 = vld [vmem:[%s1549 + $0x48] sm:$0xff]
      %v1560 = vld [vmem:[%s1549 + $0x50] sm:$0xff]
      %v1561 = vld [vmem:[%s1549 + $0x58] sm:$0xff]
      %v1562 = vld [vmem:[%s1549 + $0x60] sm:$0xff]
      %v1563 = vld [vmem:[%s1549 + $0x68] sm:$0xff]
      %v1564 = vld [vmem:[%s1549 + $0x70] sm:$0xff]
      %v1565 = vld [vmem:[%s1549 + $0x78] sm:$0xff]
      %s1566 = scalar_lea.vmem %s10, 1
      %v1567 = vld [vmem:[%s1566] sm:$0x1]
      %v1568 = vld [vmem:[#allocation3] sm:$0xff]
      %v1569 = vld [vmem:[#allocation3 + $0x1] sm:$0xff]
      %1570 = vmatprep.subr.mxu0 0.0
      %1571 = vmatpush1.msra.mxu0 %v1533
      %1572 = vmatprep.subr.mxu0 0.0
      %1573 = vmatpush1.msra.mxu0 %v1534
      %1574 = vmatprep.subr.mxu0 0.0
      %1575 = vmatpush1.msra.mxu0 %v1535
      %1576 = vmatprep.subr.mxu0 0.0
      %1577 = vmatpush1.msra.mxu0 %v1536
      %1578 = vmatprep.subr.mxu0 0.0
      %1579 = vmatpush1.msra.mxu0 %v1537
      %1580 = vmatprep.subr.mxu0 0.0
      %1581 = vmatpush1.msra.mxu0 %v1538
      %1582 = vmatprep.subr.mxu0 0.0
      %1583 = vmatpush1.msra.mxu0 %v1539
      %1584 = vmatprep.subr.mxu0 0.0
      %1585 = vmatpush1.msra.mxu0 %v1540
      %1586 = vmatprep.subr.mxu0 0.0
      %1587 = vmatpush1.msra.mxu0 %v1541
      %1588 = vmatprep.subr.mxu0 0.0
      %1589 = vmatpush1.msra.mxu0 %v1542
      %1590 = vmatprep.subr.mxu0 0.0
      %1591 = vmatpush1.msra.mxu0 %v1543
      %1592 = vmatprep.subr.mxu0 0.0
      %1593 = vmatpush1.msra.mxu0 %v1544
      %1594 = vmatprep.subr.mxu0 0.0
      %1595 = vmatpush1.msra.mxu0 %v1545
      %1596 = vmatprep.subr.mxu0 0.0
      %1597 = vmatpush1.msra.mxu0 %v1546
      %1598 = vmatprep.subr.mxu0 0.0
      %1599 = vmatpush1.msra.mxu0 %v1547
      %1600 = vmatprep.subr.mxu0 0.0
      %1601 = vmatpush1.msra.mxu0 %v1548
      %1602 = vmatprep.subr.mxu0 0.0
      %1603 = vmatpush1.msra.mxu0 0.0
      %1604 = vmatprep.subr.mxu0 0.0
      %1605 = vmatpush1.msra.mxu0 0.0
      %1606 = vmatprep.subr.mxu0 0.0
      %1607 = vmatpush1.msra.mxu0 0.0
      %1608 = vmatprep.subr.mxu0 0.0
      %1609 = vmatpush1.msra.mxu0 0.0
      %1610 = vmatprep.subr.mxu0 0.0
      %1611 = vmatpush1.msra.mxu0 0.0
      %1612 = vmatprep.subr.mxu0 0.0
      %1613 = vmatpush1.msra.mxu0 0.0
      %1614 = vmatprep.subr.mxu0 0.0
      %1615 = vmatpush1.msra.mxu0 0.0
      %1616 = vmatprep.subr.mxu0 0.0
      %1617 = vmatpush1.msra.mxu0 0.0
      %1618 = vmatprep.subr.mxu0 0.0
      %1619 = vmatpush1.msra.mxu0 0.0
      %1620 = vmatprep.subr.mxu0 0.0
      %1621 = vmatpush1.msra.mxu0 0.0
      %1622 = vmatprep.subr.mxu0 0.0
      %1623 = vmatpush1.msra.mxu0 0.0
      %1624 = vmatprep.subr.mxu0 0.0
      %1625 = vmatpush1.msra.mxu0 0.0
      %1626 = vmatprep.subr.mxu0 0.0
      %1627 = vmatpush1.msra.mxu0 0.0
      %1628 = vmatprep.subr.mxu0 0.0
      %1629 = vmatpush1.msra.mxu0 0.0
      %1630 = vmatprep.subr.mxu0 0.0
      %1631 = vmatpush1.msra.mxu0 0.0
      %1632 = vmatprep.subr.mxu0 0.0
      %1633 = vmatpush1.msra.mxu0 0.0
      %1634 = vmatprep.mubr.f32.mxu0 0.0
      %1635 = vmatmul.mubr.f32.gmra.mrb[0].mxu0 %v1569
      %v1636 = vpop.f32.mrb[0].mxu0
      %v1637 = vadd.f32 0.0, %v1636
      %v1638 = vpop.f32.mrb[0].mxu0
      %1639 = vdwg.mxu0
      %1640 = vmatprep.subr.mxu0 0.0
      %1641 = vmatpush1.msra.mxu0 %v1516
      %1642 = vmatprep.subr.mxu0 0.0
      %1643 = vmatpush1.msra.mxu0 %v1517
      %1644 = vmatprep.subr.mxu0 0.0
      %1645 = vmatpush1.msra.mxu0 %v1518
      %1646 = vmatprep.subr.mxu0 0.0
      %1647 = vmatpush1.msra.mxu0 %v1519
      %1648 = vmatprep.subr.mxu0 0.0
      %1649 = vmatpush1.msra.mxu0 %v1520
      %1650 = vmatprep.subr.mxu0 0.0
      %1651 = vmatpush1.msra.mxu0 %v1521
      %1652 = vmatprep.subr.mxu0 0.0
      %1653 = vmatpush1.msra.mxu0 %v1522
      %1654 = vmatprep.subr.mxu0 0.0
      %1655 = vmatpush1.msra.mxu0 %v1523
      %1656 = vmatprep.subr.mxu0 0.0
      %1657 = vmatpush1.msra.mxu0 %v1524
      %1658 = vmatprep.subr.mxu0 0.0
      %1659 = vmatpush1.msra.mxu0 %v1525
      %1660 = vmatprep.subr.mxu0 0.0
      %1661 = vmatpush1.msra.mxu0 %v1526
      %1662 = vmatprep.subr.mxu0 0.0
      %1663 = vmatpush1.msra.mxu0 %v1527
      %1664 = vmatprep.subr.mxu0 0.0
      %1665 = vmatpush1.msra.mxu0 %v1528
      %1666 = vmatprep.subr.mxu0 0.0
      %1667 = vmatpush1.msra.mxu0 %v1529
      %1668 = vmatprep.subr.mxu0 0.0
      %1669 = vmatpush1.msra.mxu0 %v1530
      %1670 = vmatprep.subr.mxu0 0.0
      %1671 = vmatpush1.msra.mxu0 %v1531
      %1672 = vmatprep.subr.mxu0 0.0
      %1673 = vmatpush1.msra.mxu0 0.0
      %1674 = vmatprep.subr.mxu0 0.0
      %1675 = vmatpush1.msra.mxu0 0.0
      %1676 = vmatprep.subr.mxu0 0.0
      %1677 = vmatpush1.msra.mxu0 0.0
      %1678 = vmatprep.subr.mxu0 0.0
      %1679 = vmatpush1.msra.mxu0 0.0
      %1680 = vmatprep.subr.mxu0 0.0
      %1681 = vmatpush1.msra.mxu0 0.0
      %1682 = vmatprep.subr.mxu0 0.0
      %1683 = vmatpush1.msra.mxu0 0.0
      %1684 = vmatprep.subr.mxu0 0.0
      %1685 = vmatpush1.msra.mxu0 0.0
      %1686 = vmatprep.subr.mxu0 0.0
      %1687 = vmatpush1.msra.mxu0 0.0
      %1688 = vmatprep.subr.mxu0 0.0
      %1689 = vmatpush1.msra.mxu0 0.0
      %1690 = vmatprep.subr.mxu0 0.0
      %1691 = vmatpush1.msra.mxu0 0.0
      %1692 = vmatprep.subr.mxu0 0.0
      %1693 = vmatpush1.msra.mxu0 0.0
      %1694 = vmatprep.subr.mxu0 0.0
      %1695 = vmatpush1.msra.mxu0 0.0
      %1696 = vmatprep.subr.mxu0 0.0
      %1697 = vmatpush1.msra.mxu0 0.0
      %1698 = vmatprep.subr.mxu0 0.0
      %1699 = vmatpush1.msra.mxu0 0.0
      %1700 = vmatprep.subr.mxu0 0.0
      %1701 = vmatpush1.msra.mxu0 0.0
      %1702 = vmatprep.subr.mxu0 0.0
      %1703 = vmatpush1.msra.mxu0 0.0
      %1704 = vmatprep.mubr.f32.mxu0 0.0
      %1705 = vmatmul.mubr.f32.gmra.mrb[0].mxu0 %v1568
      %v1706 = vpop.f32.mrb[0].mxu0
      %v1707 = vadd.f32 %v1637, %v1706
      %v1708 = vpop.f32.mrb[0].mxu0
      %1709 = vdwg.mxu0
      %v1710 = vld [vmem:[#allocation3 + $0x2] sm:$0xff]
      %1711 = vmatprep.subr.mxu0 0.0
      %1712 = vmatpush1.msra.mxu0 %v1550
      %1713 = vmatprep.subr.mxu0 0.0
      %1714 = vmatpush1.msra.mxu0 %v1551
      %1715 = vmatprep.subr.mxu0 0.0
      %1716 = vmatpush1.msra.mxu0 %v1552
      %1717 = vmatprep.subr.mxu0 0.0
      %1718 = vmatpush1.msra.mxu0 %v1553
      %1719 = vmatprep.subr.mxu0 0.0
      %1720 = vmatpush1.msra.mxu0 %v1554
      %1721 = vmatprep.subr.mxu0 0.0
      %1722 = vmatpush1.msra.mxu0 %v1555
      %1723 = vmatprep.subr.mxu0 0.0
      %1724 = vmatpush1.msra.mxu0 %v1556
      %1725 = vmatprep.subr.mxu0 0.0
      %1726 = vmatpush1.msra.mxu0 %v1557
      %1727 = vmatprep.subr.mxu0 0.0
      %1728 = vmatpush1.msra.mxu0 %v1558
      %1729 = vmatprep.subr.mxu0 0.0
      %1730 = vmatpush1.msra.mxu0 %v1559
      %1731 = vmatprep.subr.mxu0 0.0
      %1732 = vmatpush1.msra.mxu0 %v1560
      %1733 = vmatprep.subr.mxu0 0.0
      %1734 = vmatpush1.msra.mxu0 %v1561
      %1735 = vmatprep.subr.mxu0 0.0
      %1736 = vmatpush1.msra.mxu0 %v1562
      %1737 = vmatprep.subr.mxu0 0.0
      %1738 = vmatpush1.msra.mxu0 %v1563
      %1739 = vmatprep.subr.mxu0 0.0
      %1740 = vmatpush1.msra.mxu0 %v1564
      %1741 = vmatprep.subr.mxu0 0.0
      %1742 = vmatpush1.msra.mxu0 %v1565
      %1743 = vmatprep.subr.mxu0 0.0
      %1744 = vmatpush1.msra.mxu0 0.0
      %1745 = vmatprep.subr.mxu0 0.0
      %1746 = vmatpush1.msra.mxu0 0.0
      %1747 = vmatprep.subr.mxu0 0.0
      %1748 = vmatpush1.msra.mxu0 0.0
      %1749 = vmatprep.subr.mxu0 0.0
      %1750 = vmatpush1.msra.mxu0 0.0
      %1751 = vmatprep.subr.mxu0 0.0
      %1752 = vmatpush1.msra.mxu0 0.0
      %1753 = vmatprep.subr.mxu0 0.0
      %1754 = vmatpush1.msra.mxu0 0.0
      %1755 = vmatprep.subr.mxu0 0.0
      %1756 = vmatpush1.msra.mxu0 0.0
      %1757 = vmatprep.subr.mxu0 0.0
      %1758 = vmatpush1.msra.mxu0 0.0
      %1759 = vmatprep.subr.mxu0 0.0
      %1760 = vmatpush1.msra.mxu0 0.0
      %1761 = vmatprep.subr.mxu0 0.0
      %1762 = vmatpush1.msra.mxu0 0.0
      %1763 = vmatprep.subr.mxu0 0.0
      %1764 = vmatpush1.msra.mxu0 0.0
      %1765 = vmatprep.subr.mxu0 0.0
      %1766 = vmatpush1.msra.mxu0 0.0
      %1767 = vmatprep.subr.mxu0 0.0
      %1768 = vmatpush1.msra.mxu0 0.0
      %1769 = vmatprep.subr.mxu0 0.0
      %1770 = vmatpush1.msra.mxu0 0.0
      %1771 = vmatprep.subr.mxu0 0.0
      %1772 = vmatpush1.msra.mxu0 0.0
      %1773 = vmatprep.subr.mxu0 0.0
      %1774 = vmatpush1.msra.mxu0 0.0
      %1775 = vmatprep.mubr.f32.mxu0 0.0
      %1776 = vmatmul.mubr.f32.gmra.mrb[0].mxu0 %v1710
      %v1777 = vpop.f32.mrb[0].mxu0
      %v1778 = vadd.f32 0.0, %v1777
      %v1779 = vpop.f32.mrb[0].mxu0
      %1780 = vdwg.mxu0
      %v1781 = vadd.f32 %v1707, %v1778
      %v1783 = vlaneseq
      %v1784 = vshrl.u32 %v1783, 7
      %v1785 = vsub.s32 0, %v1784
      %v1786 = vrot.slane %v1567, %v1785
      %v1788 = vadd.f32 %v1781, %v1786
      %v1789 = vmax.f32 %v1788, 0.0
      %s1790 = scalar_lea.vmem %s11, 128
      %v1791 = vld [vmem:[%s1790] sm:$0xff]
      %v1792 = vld [vmem:[%s1790 + $0x8] sm:$0xff]
      %v1793 = vld [vmem:[%s1790 + $0x10] sm:$0xff]
      %v1794 = vld [vmem:[%s1790 + $0x18] sm:$0xff]
      %v1795 = vld [vmem:[%s1790 + $0x20] sm:$0xff]
      %v1796 = vld [vmem:[%s1790 + $0x28] sm:$0xff]
      %v1797 = vld [vmem:[%s1790 + $0x30] sm:$0xff]
      %v1798 = vld [vmem:[%s1790 + $0x38] sm:$0xff]
      %v1799 = vld [vmem:[%s1790 + $0x40] sm:$0xff]
      %v1800 = vld [vmem:[%s1790 + $0x48] sm:$0xff]
      %v1801 = vld [vmem:[%s1790 + $0x50] sm:$0xff]
      %v1802 = vld [vmem:[%s1790 + $0x58] sm:$0xff]
      %v1803 = vld [vmem:[%s1790 + $0x60] sm:$0xff]
      %v1804 = vld [vmem:[%s1790 + $0x68] sm:$0xff]
      %v1805 = vld [vmem:[%s1790 + $0x70] sm:$0xff]
      %v1806 = vld [vmem:[%s1790 + $0x78] sm:$0xff]
      %s1807 = scalar_lea.vmem %s12, 1
      %v1808 = vld [vmem:[%s1807] sm:$0x1]
      %v1810 = vlaneseq
      %v1811 = vshrl.u32 %v1810, 7
      %v1812 = vsub.s32 0, %v1811
      %v1813 = vrot.slane %v1808, %v1812
      %1815 = vmatprep.subr.mxu0 0.0
      %1816 = vmatpush1.msra.mxu0 %v1791
      %1817 = vmatprep.subr.mxu0 0.0
      %1818 = vmatpush1.msra.mxu0 %v1792
      %1819 = vmatprep.subr.mxu0 0.0
      %1820 = vmatpush1.msra.mxu0 %v1793
      %1821 = vmatprep.subr.mxu0 0.0
      %1822 = vmatpush1.msra.mxu0 %v1794
      %1823 = vmatprep.subr.mxu0 0.0
      %1824 = vmatpush1.msra.mxu0 %v1795
      %1825 = vmatprep.subr.mxu0 0.0
      %1826 = vmatpush1.msra.mxu0 %v1796
      %1827 = vmatprep.subr.mxu0 0.0
      %1828 = vmatpush1.msra.mxu0 %v1797
      %1829 = vmatprep.subr.mxu0 0.0
      %1830 = vmatpush1.msra.mxu0 %v1798
      %1831 = vmatprep.subr.mxu0 0.0
      %1832 = vmatpush1.msra.mxu0 %v1799
      %1833 = vmatprep.subr.mxu0 0.0
      %1834 = vmatpush1.msra.mxu0 %v1800
      %1835 = vmatprep.subr.mxu0 0.0
      %1836 = vmatpush1.msra.mxu0 %v1801
      %1837 = vmatprep.subr.mxu0 0.0
      %1838 = vmatpush1.msra.mxu0 %v1802
      %1839 = vmatprep.subr.mxu0 0.0
      %1840 = vmatpush1.msra.mxu0 %v1803
      %1841 = vmatprep.subr.mxu0 0.0
      %1842 = vmatpush1.msra.mxu0 %v1804
      %1843 = vmatprep.subr.mxu0 0.0
      %1844 = vmatpush1.msra.mxu0 %v1805
      %1845 = vmatprep.subr.mxu0 0.0
      %1846 = vmatpush1.msra.mxu0 %v1806
      %1847 = vmatprep.subr.mxu0 0.0
      %1848 = vmatpush1.msra.mxu0 0.0
      %1849 = vmatprep.subr.mxu0 0.0
      %1850 = vmatpush1.msra.mxu0 0.0
      %1851 = vmatprep.subr.mxu0 0.0
      %1852 = vmatpush1.msra.mxu0 0.0
      %1853 = vmatprep.subr.mxu0 0.0
      %1854 = vmatpush1.msra.mxu0 0.0
      %1855 = vmatprep.subr.mxu0 0.0
      %1856 = vmatpush1.msra.mxu0 0.0
      %1857 = vmatprep.subr.mxu0 0.0
      %1858 = vmatpush1.msra.mxu0 0.0
      %1859 = vmatprep.subr.mxu0 0.0
      %1860 = vmatpush1.msra.mxu0 0.0
      %1861 = vmatprep.subr.mxu0 0.0
      %1862 = vmatpush1.msra.mxu0 0.0
      %1863 = vmatprep.subr.mxu0 0.0
      %1864 = vmatpush1.msra.mxu0 0.0
      %1865 = vmatprep.subr.mxu0 0.0
      %1866 = vmatpush1.msra.mxu0 0.0
      %1867 = vmatprep.subr.mxu0 0.0
      %1868 = vmatpush1.msra.mxu0 0.0
      %1869 = vmatprep.subr.mxu0 0.0
      %1870 = vmatpush1.msra.mxu0 0.0
      %1871 = vmatprep.subr.mxu0 0.0
      %1872 = vmatpush1.msra.mxu0 0.0
      %1873 = vmatprep.subr.mxu0 0.0
      %1874 = vmatpush1.msra.mxu0 0.0
      %1875 = vmatprep.subr.mxu0 0.0
      %1876 = vmatpush1.msra.mxu0 0.0
      %1877 = vmatprep.subr.mxu0 0.0
      %1878 = vmatpush1.msra.mxu0 0.0
      %1879 = vmatprep.mubr.f32.mxu0 0.0
      %1880 = vmatmul.mubr.f32.gmra.mrb[0].mxu0 %v1789
      %v1881 = vpop.f32.mrb[0].mxu0
      %v1882 = vadd.f32 %v1813, %v1881
      %v1883 = vpop.f32.mrb[0].mxu0
      %1884 = vdwg.mxu0
      %v1885 = vadd.f32 %v1512, %v1882
      %v1886 = vmax.f32 %v1885, 0.0
      %v1887 = vld [vmem:[%s13] sm:$0xff]
      %v1888 = vld [vmem:[%s13 + $0x8] sm:$0xff]
      %v1889 = vld [vmem:[%s13 + $0x10] sm:$0xff]
      %v1890 = vld [vmem:[%s13 + $0x18] sm:$0xff]
      %v1891 = vld [vmem:[%s13 + $0x20] sm:$0xff]
      %v1892 = vld [vmem:[%s13 + $0x28] sm:$0xff]
      %v1893 = vld [vmem:[%s13 + $0x30] sm:$0xff]
      %v1894 = vld [vmem:[%s13 + $0x38] sm:$0xff]
      %v1895 = vld [vmem:[%s13 + $0x40] sm:$0xff]
      %v1896 = vld [vmem:[%s13 + $0x48] sm:$0xff]
      %v1897 = vld [vmem:[%s13 + $0x50] sm:$0xff]
      %v1898 = vld [vmem:[%s13 + $0x58] sm:$0xff]
      %v1899 = vld [vmem:[%s13 + $0x60] sm:$0xff]
      %v1900 = vld [vmem:[%s13 + $0x68] sm:$0xff]
      %v1901 = vld [vmem:[%s13 + $0x70] sm:$0xff]
      %v1902 = vld [vmem:[%s13 + $0x78] sm:$0xff]
      %v1903 = vld [vmem:[%s14] sm:$0x1]
      %v1905 = vlaneseq
      %v1906 = vshrl.u32 %v1905, 7
      %v1907 = vsub.s32 0, %v1906
      %v1908 = vrot.slane %v1903, %v1907
      %1910 = vmatprep.subr.mxu0 0.0
      %1911 = vmatpush1.msra.mxu0 %v1887
      %1912 = vmatprep.subr.mxu0 0.0
      %1913 = vmatpush1.msra.mxu0 %v1888
      %1914 = vmatprep.subr.mxu0 0.0
      %1915 = vmatpush1.msra.mxu0 %v1889
      %1916 = vmatprep.subr.mxu0 0.0
      %1917 = vmatpush1.msra.mxu0 %v1890
      %1918 = vmatprep.subr.mxu0 0.0
      %1919 = vmatpush1.msra.mxu0 %v1891
      %1920 = vmatprep.subr.mxu0 0.0
      %1921 = vmatpush1.msra.mxu0 %v1892
      %1922 = vmatprep.subr.mxu0 0.0
      %1923 = vmatpush1.msra.mxu0 %v1893
      %1924 = vmatprep.subr.mxu0 0.0
      %1925 = vmatpush1.msra.mxu0 %v1894
      %1926 = vmatprep.subr.mxu0 0.0
      %1927 = vmatpush1.msra.mxu0 %v1895
      %1928 = vmatprep.subr.mxu0 0.0
      %1929 = vmatpush1.msra.mxu0 %v1896
      %1930 = vmatprep.subr.mxu0 0.0
      %1931 = vmatpush1.msra.mxu0 %v1897
      %1932 = vmatprep.subr.mxu0 0.0
      %1933 = vmatpush1.msra.mxu0 %v1898
      %1934 = vmatprep.subr.mxu0 0.0
      %1935 = vmatpush1.msra.mxu0 %v1899
      %1936 = vmatprep.subr.mxu0 0.0
      %1937 = vmatpush1.msra.mxu0 %v1900
      %1938 = vmatprep.subr.mxu0 0.0
      %1939 = vmatpush1.msra.mxu0 %v1901
      %1940 = vmatprep.subr.mxu0 0.0
      %1941 = vmatpush1.msra.mxu0 %v1902
      %1942 = vmatprep.subr.mxu0 0.0
      %1943 = vmatpush1.msra.mxu0 0.0
      %1944 = vmatprep.subr.mxu0 0.0
      %1945 = vmatpush1.msra.mxu0 0.0
      %1946 = vmatprep.subr.mxu0 0.0
      %1947 = vmatpush1.msra.mxu0 0.0
      %1948 = vmatprep.subr.mxu0 0.0
      %1949 = vmatpush1.msra.mxu0 0.0
      %1950 = vmatprep.subr.mxu0 0.0
      %1951 = vmatpush1.msra.mxu0 0.0
      %1952 = vmatprep.subr.mxu0 0.0
      %1953 = vmatpush1.msra.mxu0 0.0
      %1954 = vmatprep.subr.mxu0 0.0
      %1955 = vmatpush1.msra.mxu0 0.0
      %1956 = vmatprep.subr.mxu0 0.0
      %1957 = vmatpush1.msra.mxu0 0.0
      %1958 = vmatprep.subr.mxu0 0.0
      %1959 = vmatpush1.msra.mxu0 0.0
      %1960 = vmatprep.subr.mxu0 0.0
      %1961 = vmatpush1.msra.mxu0 0.0
      %1962 = vmatprep.subr.mxu0 0.0
      %1963 = vmatpush1.msra.mxu0 0.0
      %1964 = vmatprep.subr.mxu0 0.0
      %1965 = vmatpush1.msra.mxu0 0.0
      %1966 = vmatprep.subr.mxu0 0.0
      %1967 = vmatpush1.msra.mxu0 0.0
      %1968 = vmatprep.subr.mxu0 0.0
      %1969 = vmatpush1.msra.mxu0 0.0
      %1970 = vmatprep.subr.mxu0 0.0
      %1971 = vmatpush1.msra.mxu0 0.0
      %1972 = vmatprep.subr.mxu0 0.0
      %1973 = vmatpush1.msra.mxu0 0.0
      %1974 = vmatprep.mubr.f32.mxu0 0.0
      %1975 = vmatmul.mubr.f32.gmra.mrb[0].mxu0 %v1886
      %v1976 = vpop.f32.mrb[0].mxu0
      %v1977 = vadd.f32 %v1908, %v1976
      %v1978 = vpop.f32.mrb[0].mxu0
      %1979 = vdwg.mxu0
      %1980 = vst [vmem:[%s492] sm:$0xff] %v1977
      %p1981 = scmp.lt.s32.totalorder %s26, 1
      %s1982 = scalar_select %p1981, %s26, 1
      %s1983 = smul.addr %s1982, 8
      %s1984 = scalar_lea.vmem %s15, %s1983
      // Predicated region
      $region81: #{unet_encoder_forward.1} parent=79 // pred_check
        %p1985 = pneg %p364
      $region82: #{unet_encoder_forward.1} parent=79 // pred_check_branch
        %1987 = sbr.rel (%p1985) target = $region84
      $region83: #{unet_encoder_forward.1} parent=79 // pred_region
        _
      $region84: #{unet_encoder_forward.1} parent=79 // pred_fallthru
        _
    $region80: #{unet_encoder_forward.1} parent=5 // pred_fallthru
      _
    %p1988 = scmp.le.s32.totalorder 2, %s21
    // Predicated region
    $region85: #{unet_encoder_forward.1} parent=5 // pred_check
      %p1989 = pneg %p1988
    $region86: #{unet_encoder_forward.1} parent=5 // pred_check_branch
      %1991 = sbr.rel (%p1989) target = $region88
    $region87: #{unet_encoder_forward.1} parent=5 // pred_region
      %s1992 = ssub.s32 %s21, 2
      // Predicated region
      $region89: #{unet_encoder_forward.1} parent=87 // pred_check
        %p1993 = pneg %p370
      $region90: #{unet_encoder_forward.1} parent=87 // pred_check_branch
        %1995 = sbr.rel (%p1993) target = $region92
      $region91: #{unet_encoder_forward.1} parent=87 // pred_region
        %p1996 = scmp.lt.s32.totalorder %s27, 1
        %s1997 = scalar_select %p1996, %s27, 1
        %s1998 = smul.addr %s1997, 8
        %s1999 = scalar_lea.vmem %s15, %s1998
      $region92: #{unet_encoder_forward.1} parent=87 // pred_fallthru
        _
    $region88: #{unet_encoder_forward.1} parent=5 // pred_fallthru
      _
  $region6: #{unet_encoder_forward.1} parent=0 // loop_footer
    %s25 = sadd.s32 1, %s21
  $region7: #{unet_encoder_forward.1} parent=0 // loop_footer_branch
    %20 = sbr.rel target = $region3
  $region8: #{unet_encoder_forward.1} parent=0 // loop_exit
    _

</llo_original>
